<compile_context>
chip_gen: v5e
topology: v5e:2x2
jax: 0.10.0
libtpu: 0.0.40
codegen_flags: <defaults>
</compile_context>

<pallas_src>
import jax
import jax.numpy as jnp
from jax.experimental import pallas as pl
from jax.experimental.pallas import tpu as pltpu


# ----------------------------------------------------------------------------
# small helpers
# ----------------------------------------------------------------------------
def _full_spec(shape):
    """Whole-array block, constant index map: fetched once, resident in VMEM."""
    zero = (0,) * len(shape)
    return pl.BlockSpec(tuple(shape), lambda b, n, _z=zero: _z)


def _compiler_params(dimension_semantics):
    """Per-generation VMEM limit (<= 3/4 of physical capacity), never hardcoded."""
    kw = dict(dimension_semantics=dimension_semantics)
    try:
        cap = int(pltpu.get_tpu_info().vmem_capacity_bytes)
        kw["vmem_limit_bytes"] = (cap * 3) // 4
    except Exception:
        pass  # fall back to the compiler default scoped-VMEM limit
    return pltpu.CompilerParams(**kw)


def _transform_tile(pose_row, xt):
    """Rigid-transform one channels-first point tile.

    pose_row: (1, 7) = (tx,ty,tz, qw,qx,qy,qz); quaternion may be unnormalized.
    xt:       (3, TN) points, channels on sublanes, points on lanes.
    Returns (3, TN) lane-dense.
    """
    tx, ty, tz = pose_row[:, 0:1], pose_row[:, 1:2], pose_row[:, 2:3]
    qw, qx, qy, qz = (pose_row[:, 3:4], pose_row[:, 4:5],
                      pose_row[:, 5:6], pose_row[:, 6:7])
    inv_n = jax.lax.rsqrt(qw * qw + qx * qx + qy * qy + qz * qz + 1e-12)
    w, x, y, z = qw * inv_n, qx * inv_n, qy * inv_n, qz * inv_n
    r00 = 1.0 - 2.0 * (y * y + z * z)
    r01 = 2.0 * (x * y - w * z)
    r02 = 2.0 * (x * z + w * y)
    r10 = 2.0 * (x * y + w * z)
    r11 = 1.0 - 2.0 * (x * x + z * z)
    r12 = 2.0 * (y * z - w * x)
    r20 = 2.0 * (x * z - w * y)
    r21 = 2.0 * (y * z + w * x)
    r22 = 1.0 - 2.0 * (x * x + y * y)
    px, py, pz = xt[0:1, :], xt[1:2, :], xt[2:3, :]
    return jnp.concatenate([
        r00 * px + r01 * py + r02 * pz + tx,
        r10 * px + r11 * py + r12 * pz + ty,
        r20 * px + r21 * py + r22 * pz + tz,
    ], axis=0)


# ----------------------------------------------------------------------------
# Kernel 1: LocNet MLP (tiled over points) + pooled-feature accumulator
#           + FC head + pose composition + initial (sensor c2w) transform
# ----------------------------------------------------------------------------
def _locnet_initial_kernel(x_ref, spw_ref, sp_ref,
                           w1t_ref, b1c_ref, w2t_ref, b2c_ref, w3t_ref, b3c_ref,
                           wf1_ref, bf1_ref, wf2t_ref, bf2c_ref,
                           obs_init_ref, lnet_ref, pose_ref,
                           g_acc):
    b = pl.program_id(0)
    n = pl.program_id(1)
    n_tiles = pl.num_programs(1)

    xt = x_ref[0]                                            # (3, TN) f32

    # -- initial transform (pose-independent), written lane-dense per tile --
    obs_init_ref[0] = _transform_tile(spw_ref[pl.ds(b, 1), :], xt)

    # -- per-point MLP, channels-first (channels on sublanes, points on lanes) --
    px, py, pz = xt[0:1, :], xt[1:2, :], xt[2:3, :]
    w1t = w1t_ref[...]                                       # (64, 3)
    h = (w1t[:, 0:1] * px + w1t[:, 1:2] * py + w1t[:, 2:3] * pz
         + b1c_ref[...])                                     # K=3 layer as VPU FMAs
    h = jnp.maximum(h, 0.0)                                  # (64, TN) f32
    h = jnp.dot(w2t_ref[...], h,
                preferred_element_type=jnp.float32) + b2c_ref[...]
    h = jnp.maximum(h, 0.0)                                  # (128, TN) f32
    h = jnp.dot(w3t_ref[...], h.astype(jnp.bfloat16),        # bf16 in, f32 acc
                preferred_element_type=jnp.float32) + b3c_ref[...]
    h = jnp.maximum(h, 0.0)                                  # (256, TN) f32

    # -- running max-pool over the point tiles of this scan --
    @pl.when(n == 0)
    def _init():
        g_acc[...] = jnp.full_like(g_acc, -jnp.inf)

    g_acc[...] = jnp.maximum(g_acc[...], jnp.max(h, axis=1, keepdims=True))

    # -- FC head + pose composition once per scan, on its last point tile --
    @pl.when(n == n_tiles - 1)
    def _head():
        g = g_acc[...]                                       # (256, 1)
        # FC1: f[j] = sum_k wf1[k, j] * g[k]   (VPU mul + sublane reduce)
        f = jnp.maximum(
            jnp.sum(wf1_ref[...] * g, axis=0, keepdims=True) + bf1_ref[...], 0.0)
        # FC2: lnet[j] = sum_k wf2t[j, k] * f[k]  (VPU mul + lane reduce)
        lnet = jnp.sum(wf2t_ref[...] * f, axis=1, keepdims=True) + bf2c_ref[...]
        lnet_ref[0] = lnet                                   # one (7,1) store

        # pose_est = (t_lnet + t_sensor, q_lnet (x) q_sensor), unnormalized quat
        sp = sp_ref[pl.ds(b, 1), :]                          # (1, 7) sensor (w2c)
        tx = lnet[0:1, :] + sp[:, 0:1]
        ty = lnet[1:2, :] + sp[:, 1:2]
        tz = lnet[2:3, :] + sp[:, 2:3]
        lw, lx, ly, lz = lnet[3:4, :], lnet[4:5, :], lnet[5:6, :], lnet[6:7, :]
        sw, sx, sy, sz = sp[:, 3:4], sp[:, 4:5], sp[:, 5:6], sp[:, 6:7]
        qw = lw * sw - lx * sx - ly * sy - lz * sz
        qx = lw * sx + lx * sw + ly * sz - lz * sy
        qy = lw * sy - lx * sz + ly * sw + lz * sx
        qz = lw * sz + lx * sy - ly * sx + lz * sw
        pose_ref[0] = jnp.concatenate([tx, ty, tz, qw, qx, qy, qz], axis=0)


# ----------------------------------------------------------------------------
# Kernel 2: global transform with the estimated pose (second pass over points)
# ----------------------------------------------------------------------------
def _global_transform_kernel(pose_ref, x_ref, out_ref):
    b = pl.program_id(0)
    out_ref[0] = _transform_tile(pose_ref[pl.ds(b, 1), :], x_ref[0])


# ----------------------------------------------------------------------------
# wrapper
# ----------------------------------------------------------------------------
def dm2_fused_forward(obs_local, sensor_pose, sensor_pose_c2w, weights,
                      tile_n=2048, channels_first_outputs=False):
    """obs_local (B,N,3) f32 -> (obs_initial, obs_global_est, pose_est, l_net_out).

    tile_n: point-tile size; sweep per chip (~2048 on v7x / 64 MiB VMEM,
    4096-8192 on v5e/v6e / 128 MiB).
    """
    B, N, _ = obs_local.shape
    w1, b1, w2, b2, w3, b3, wf1, bf1, wf2, bf2 = weights

    # channels-first weight/bias forms (tiny one-off XLA transposes)
    w1t, b1c = w1.T, b1.T                                  # (64,3), (64,1)
    w2t, b2c = w2.T, b2.T                                  # (128,64), (128,1)
    w3t, b3c = w3.T.astype(jnp.bfloat16), b3.T             # (256,128) bf16, (256,1)
    wf2t, bf2c = wf2.T, bf2.T                              # (7,128), (7,1)
    # wf1 (256,128) / bf1 (1,128) are used in their original orientation.

    # channels-first point cloud: points on lanes -> lane-dense DMAs everywhere
    x_cn = jnp.transpose(obs_local, (0, 2, 1))             # (B, 3, N)

    # choose a lane-aligned point tile; pad with edge-replicated points if needed
    # (duplicated real points leave the max-pool unchanged)
    if N <= tile_n:
        tn, n_pad = N, N
    else:
        tn = max(128, (tile_n // 128) * 128)
        n_pad = ((N + tn - 1) // tn) * tn
        if n_pad != N:
            x_cn = jnp.pad(x_cn, ((0, 0), (0, 0), (0, n_pad - N)), mode="edge")
    n_tiles = n_pad // tn

    tile_spec = pl.BlockSpec((1, 3, tn), lambda b, n: (b, 0, n))
    # If xprof shows exposed DMA on x_cn (likely only on v5e), add
    # pipeline_mode=pl.Buffered(3) to tile_spec.

    small_inputs = (sensor_pose_c2w, sensor_pose,
                    w1t, b1c, w2t, b2c, w3t, b3c, wf1, bf1, wf2t, bf2c)

    obs_init_cn, lnet_col, pose_col = pl.pallas_call(
        _locnet_initial_kernel,
        grid=(B, n_tiles),
        in_specs=[tile_spec] + [_full_spec(a.shape) for a in small_inputs],
        out_specs=[
            pl.BlockSpec((1, 3, tn), lambda b, n: (b, 0, n)),   # obs_initial (cf)
            pl.BlockSpec((1, 7, 1), lambda b, n: (b, 0, 0)),    # l_net_out
            pl.BlockSpec((1, 7, 1), lambda b, n: (b, 0, 0)),    # pose_est
        ],
        out_shape=(
            jax.ShapeDtypeStruct((B, 3, n_pad), jnp.float32),
            jax.ShapeDtypeStruct((B, 7, 1), jnp.float32),
            jax.ShapeDtypeStruct((B, 7, 1), jnp.float32),
        ),
        scratch_shapes=[pltpu.VMEM((w3.shape[1], 1), jnp.float32)],  # pooled max
        compiler_params=_compiler_params(("parallel", "arbitrary")),
    )(x_cn, *small_inputs)

    l_net_out = lnet_col[:, :, 0]                           # (B, 7)
    pose_est = pose_col[:, :, 0]                            # (B, 7)

    obs_glob_cn = pl.pallas_call(
        _global_transform_kernel,
        grid=(B, n_tiles),
        in_specs=[_full_spec(pose_est.shape), tile_spec],
        out_specs=pl.BlockSpec((1, 3, tn), lambda b, n: (b, 0, n)),
        out_shape=jax.ShapeDtypeStruct((B, 3, n_pad), jnp.float32),
        compiler_params=_compiler_params(("parallel", "parallel")),
    )(pose_est, x_cn)

    if n_pad != N:
        obs_init_cn = obs_init_cn[:, :, :N]
        obs_glob_cn = obs_glob_cn[:, :, :N]

    if channels_first_outputs:
        # avoids an extra HBM read+write of the two big outputs (biggest win on v5e)
        return obs_init_cn, obs_glob_cn, pose_est, l_net_out
    return (jnp.transpose(obs_init_cn, (0, 2, 1)),
            jnp.transpose(obs_glob_cn, (0, 2, 1)),
            pose_est, l_net_out)


# ----------------------------------------------------------------------------
# JAX glue: quaternion algebra, w2c->c2w, params update
# ----------------------------------------------------------------------------
def quat_normalize(q):
    return q / jnp.linalg.norm(q, axis=-1, keepdims=True)


def quat_conj(q):
    return q * jnp.array([1.0, -1.0, -1.0, -1.0], dtype=q.dtype)


def qmul(q1, q2):
    """Hamilton product, wxyz convention (matches qmul_torch)."""
    w1, x1, y1, z1 = q1[:, 0], q1[:, 1], q1[:, 2], q1[:, 3]
    w2, x2, y2, z2 = q2[:, 0], q2[:, 1], q2[:, 2], q2[:, 3]
    return jnp.stack([
        w1 * w2 - x1 * x2 - y1 * y2 - z1 * z2,
        w1 * x2 + x1 * w2 + y1 * z2 - z1 * y2,
        w1 * y2 - x1 * z2 + y1 * w2 + z1 * x2,
        w1 * z2 + x1 * y2 - y1 * x2 + z1 * w2,
    ], axis=1)


def quat_rotate_vec(q, v):
    w = q[:, 0:1]
    qv = q[:, 1:]
    uv = jnp.cross(qv, v)
    uuv = jnp.cross(qv, uv)
    return v + 2.0 * (w * uv + uuv)


def w2c_to_c2w(pose_w2c):
    """(B,7) w2c pose (t, q_wxyz) -> (B,7) c2w pose."""
    t = pose_w2c[:, :3]
    q = quat_normalize(pose_w2c[:, 3:])
    q_inv = quat_conj(q)
    t_c2w = -quat_rotate_vec(q_inv, t)
    return jnp.concatenate([t_c2w, q_inv], axis=1)


def deepmapping2_forward(obs_local, params, group_matrix, params_init,
                         locnet_weights, tile_n=2048):
    """Inference-mode forward of DeepMapping2 (quaternion representation)."""
    # --- build sensor_pose from params_init (no_grad block in torch) ---
    cam_trans = params_init["cam_trans"]          # (1, 3, T)
    cam_rots = params_init["cam_unnorm_rots"]     # (1, 4, T)
    t_sel = cam_trans[0][:, group_matrix].T       # (B, 3)
    q_sel = cam_rots[0][:, group_matrix].T        # (B, 4)
    sensor_pose = jnp.concatenate([t_sel, q_sel], axis=-1)   # (B, 7)
    sensor_pose_c2w = w2c_to_c2w(sensor_pose)

    # --- Pallas kernels: LocNet + pose composition + both transforms ---
    obs_initial, obs_global_est, pose_est, l_net_out = dm2_fused_forward(
        obs_local, sensor_pose, sensor_pose_c2w, locnet_weights, tile_n=tile_n)

    # --- write estimated poses back into (a copy of) params ---
    new_params = dict(params)
    new_params["cam_unnorm_rots"] = params["cam_unnorm_rots"].at[:, :, group_matrix].set(
        pose_est[:, 3:].T[None])
    new_params["cam_trans"] = params["cam_trans"].at[:, :, group_matrix].set(
        pose_est[:, :3].T[None])

    return obs_initial, obs_global_est, pose_est, l_net_out, new_params


# ----------------------------------------------------------------------------
# Pure-JAX references (for correctness checks of the Pallas kernels)
# ----------------------------------------------------------------------------
def locnet_ref(x, W):
    w1, b1, w2, b2, w3, b3, wf1, bf1, wf2, bf2 = W
    h = jax.nn.relu(x @ w1 + b1)
    h = jax.nn.relu(h @ w2 + b2)
    h = jax.nn.relu(h @ w3 + b3)
    g = h.max(axis=1)                      # (B, 256)
    f = jax.nn.relu(g @ wf1 + bf1)
    return f @ wf2 + bf2


def transform_ref(pose, pts):
    t = pose[:, :3]
    q = quat_normalize(pose[:, 3:])
    w, x, y, z = q[:, 0], q[:, 1], q[:, 2], q[:, 3]
    R = jnp.stack([
        jnp.stack([1 - 2 * (y * y + z * z), 2 * (x * y - w * z), 2 * (x * z + w * y)], -1),
        jnp.stack([2 * (x * y + w * z), 1 - 2 * (x * x + z * z), 2 * (y * z - w * x)], -1),
        jnp.stack([2 * (x * z - w * y), 2 * (y * z + w * x), 1 - 2 * (x * x + y * y)], -1),
    ], axis=1)                              # (B, 3, 3)
    return jnp.einsum("bij,bnj->bni", R, pts) + t[:, None, :]


# ----------------------------------------------------------------------------
# main
# ----------------------------------------------------------------------------
if __name__ == "__main__":
    key = jax.random.PRNGKey(0)
    B, N, T = 2, 128, 8                  # group size, points per scan, total frames
    dims_conv = [3, 64, 128, 256]        # per-point MLP widths (Conv1d k=1 stack)
    dims_fc = [256, 128, 7]              # FC head -> out_dims=7 (quaternion branch)

    keys = jax.random.split(key, 16)

    # point clouds (B, N, 3)
    obs_local = jax.random.normal(keys[0], (B, N, 3), dtype=jnp.float32)

    # params / params_init : SplaTAM-style camera parameters
    cam_trans_init = 0.1 * jax.random.normal(keys[1], (1, 3, T), dtype=jnp.float32)
    rot_noise = 0.05 * jax.random.normal(keys[2], (1, 4, T), dtype=jnp.float32)
    cam_rots_init = rot_noise.at[0, 0, :].add(1.0)        # near-identity wxyz quats
    params_init = {"cam_trans": cam_trans_init, "cam_unnorm_rots": cam_rots_init}
    params = {
        "cam_trans": cam_trans_init + 0.01,
        "cam_unnorm_rots": cam_rots_init,
    }
    group_matrix = jnp.array([0, 3], dtype=jnp.int32)     # frame indices for this group

    # deterministic LocNet weights (3 conv layers + 2 FC layers -> 10 arrays)
    def dense(k, fan_in, fan_out):
        w = (1.0 / jnp.sqrt(fan_in)) * jax.random.normal(k, (fan_in, fan_out), jnp.float32)
        b = jnp.zeros((1, fan_out), jnp.float32)
        return w, b

    W = []
    ki = 3
    for i in range(len(dims_conv) - 1):
        w, b = dense(keys[ki], dims_conv[i], dims_conv[i + 1]); ki += 1
        W += [w, b]
    for i in range(len(dims_fc) - 1):
        w, b = dense(keys[ki], dims_fc[i], dims_fc[i + 1]); ki += 1
        W += [w, b]
    W = tuple(W)
    assert len(W) == 10

    obs_initial, obs_global_est, pose_est, l_net_out, new_params = deepmapping2_forward(
        obs_local, params, group_matrix, params_init, W)
    jax.block_until_ready((obs_initial, obs_global_est, pose_est, l_net_out, new_params))

    # --- correctness checks against pure-JAX references ---
    # 1) LocNet vs f32 reference (only the 128->256 layer uses bf16 MXU inputs)
    l_ref = locnet_ref(obs_local, W)
    assert jnp.allclose(l_net_out, l_ref, rtol=2e-2, atol=2e-2), "locnet mismatch"

    # 2) pose composition (f32 in-kernel math) vs qmul reference on the kernel's own lnet
    t_sel = params_init["cam_trans"][0][:, group_matrix].T
    q_sel = params_init["cam_unnorm_rots"][0][:, group_matrix].T
    sensor_pose = jnp.concatenate([t_sel, q_sel], axis=-1)
    pose_from_kernel_lnet = jnp.concatenate(
        [l_net_out[:, :3] + sensor_pose[:, :3],
         qmul(l_net_out[:, 3:], sensor_pose[:, 3:])], axis=1)
    assert jnp.allclose(pose_est, pose_from_kernel_lnet, rtol=1e-4, atol=1e-4), \
        "pose composition mismatch"

    # 3) initial transform (pure f32 path)
    obs_init_ref = transform_ref(w2c_to_c2w(sensor_pose), obs_local)
    assert jnp.allclose(obs_initial, obs_init_ref, rtol=5e-3, atol=5e-3), \
        "initial transform mismatch"

    # 4) global transform validated against the kernel's own pose_est
    obs_glob_ref = transform_ref(pose_est, obs_local)
    assert jnp.allclose(obs_global_est, obs_glob_ref, rtol=5e-3, atol=5e-3), \
        "global transform mismatch"

    print("KERNEL_OK")
</pallas_src>

<mosaic_0001>
module attributes {stable_mosaic.version = 11 : i64} {
  func.func @_locnet_initial_kernel(%arg0: i32, %arg1: i32, %arg2: memref<1x3x128xf32, #tpu.memory_space<vmem>>, %arg3: memref<2x7xf32, #tpu.memory_space<vmem>>, %arg4: memref<2x7xf32, #tpu.memory_space<vmem>>, %arg5: memref<64x3xf32, #tpu.memory_space<vmem>>, %arg6: memref<64x1xf32, #tpu.memory_space<vmem>>, %arg7: memref<128x64xf32, #tpu.memory_space<vmem>>, %arg8: memref<128x1xf32, #tpu.memory_space<vmem>>, %arg9: memref<256x128xbf16, #tpu.memory_space<vmem>>, %arg10: memref<256x1xf32, #tpu.memory_space<vmem>>, %arg11: memref<256x128xf32, #tpu.memory_space<vmem>>, %arg12: memref<1x128xf32, #tpu.memory_space<vmem>>, %arg13: memref<7x128xf32, #tpu.memory_space<vmem>>, %arg14: memref<7x1xf32, #tpu.memory_space<vmem>>, %arg15: memref<1x3x128xf32, #tpu.memory_space<vmem>>, %arg16: memref<1x7x1xf32, #tpu.memory_space<vmem>>, %arg17: memref<1x7x1xf32, #tpu.memory_space<vmem>>, %arg18: memref<256x1xf32, #tpu.memory_space<vmem>>) attributes {dimension_semantics = [#tpu.dimension_semantics<parallel>, #tpu.dimension_semantics<arbitrary>], iteration_bounds = array<i64: 2, 1>, scalar_prefetch = 0 : i64, scratch_operands = 1 : i64, tpu.core_type = #tpu.core_type<tc>, window_params = [{transform_indices = @transform_0, window_bounds = array<i64: 1, 3, 128>}, {pipeline_mode = #tpu.pipeline_mode<synchronous>, transform_indices = @transform_1, window_bounds = array<i64: 2, 7>}, {pipeline_mode = #tpu.pipeline_mode<synchronous>, transform_indices = @transform_2, window_bounds = array<i64: 2, 7>}, {pipeline_mode = #tpu.pipeline_mode<synchronous>, transform_indices = @transform_3, window_bounds = array<i64: 64, 3>}, {pipeline_mode = #tpu.pipeline_mode<synchronous>, transform_indices = @transform_4, window_bounds = array<i64: 64, 1>}, {pipeline_mode = #tpu.pipeline_mode<synchronous>, transform_indices = @transform_5, window_bounds = array<i64: 128, 64>}, {pipeline_mode = #tpu.pipeline_mode<synchronous>, transform_indices = @transform_6, window_bounds = array<i64: 128, 1>}, {pipeline_mode = #tpu.pipeline_mode<synchronous>, transform_indices = @transform_7, window_bounds = array<i64: 256, 128>}, {pipeline_mode = #tpu.pipeline_mode<synchronous>, transform_indices = @transform_8, window_bounds = array<i64: 256, 1>}, {pipeline_mode = #tpu.pipeline_mode<synchronous>, transform_indices = @transform_9, window_bounds = array<i64: 256, 128>}, {pipeline_mode = #tpu.pipeline_mode<synchronous>, transform_indices = @transform_10, window_bounds = array<i64: 1, 128>}, {pipeline_mode = #tpu.pipeline_mode<synchronous>, transform_indices = @transform_11, window_bounds = array<i64: 7, 128>}, {pipeline_mode = #tpu.pipeline_mode<synchronous>, transform_indices = @transform_12, window_bounds = array<i64: 7, 1>}, {transform_indices = @transform_13, window_bounds = array<i64: 1, 3, 128>}, {transform_indices = @transform_14, window_bounds = array<i64: 1, 7, 1>}, {transform_indices = @transform_15, window_bounds = array<i64: 1, 7, 1>}]} {
    %c0 = arith.constant 0 : index
    %c0_0 = arith.constant 0 : index
    %c0_1 = arith.constant 0 : index
    %0 = vector.load %arg2[%c0, %c0_0, %c0_1] : memref<1x3x128xf32, #tpu.memory_space<vmem>>, vector<1x3x128xf32>
    %1 = vector.shape_cast %0 : vector<1x3x128xf32> to vector<3x128xf32>
    %2 = arith.index_cast %arg0 : i32 to index
    %c0_2 = arith.constant 0 : index
    %3 = vector.load %arg3[%2, %c0_2] : memref<2x7xf32, #tpu.memory_space<vmem>>, vector<1x7xf32>
    %4 = vector.extract_strided_slice %3 {offsets = [0, 0], sizes = [1, 1], strides = [1, 1]} : vector<1x7xf32> to vector<1x1xf32>
    %5 = vector.extract_strided_slice %3 {offsets = [0, 1], sizes = [1, 1], strides = [1, 1]} : vector<1x7xf32> to vector<1x1xf32>
    %6 = vector.extract_strided_slice %3 {offsets = [0, 2], sizes = [1, 1], strides = [1, 1]} : vector<1x7xf32> to vector<1x1xf32>
    %7 = vector.extract_strided_slice %3 {offsets = [0, 3], sizes = [1, 1], strides = [1, 1]} : vector<1x7xf32> to vector<1x1xf32>
    %8 = vector.extract_strided_slice %3 {offsets = [0, 4], sizes = [1, 1], strides = [1, 1]} : vector<1x7xf32> to vector<1x1xf32>
    %9 = vector.extract_strided_slice %3 {offsets = [0, 5], sizes = [1, 1], strides = [1, 1]} : vector<1x7xf32> to vector<1x1xf32>
    %10 = vector.extract_strided_slice %3 {offsets = [0, 6], sizes = [1, 1], strides = [1, 1]} : vector<1x7xf32> to vector<1x1xf32>
    %11 = arith.mulf %7, %7 : vector<1x1xf32>
    %12 = arith.mulf %8, %8 : vector<1x1xf32>
    %13 = arith.addf %11, %12 : vector<1x1xf32>
    %14 = arith.mulf %9, %9 : vector<1x1xf32>
    %15 = arith.addf %13, %14 : vector<1x1xf32>
    %16 = arith.mulf %10, %10 : vector<1x1xf32>
    %17 = arith.addf %15, %16 : vector<1x1xf32>
    %cst = arith.constant 9.99999996E-13 : f32
    %18 = vector.broadcast %cst : f32 to vector<1x1xf32>
    %19 = arith.addf %17, %18 : vector<1x1xf32>
    %20 = math.rsqrt %19 : vector<1x1xf32>
    %21 = arith.mulf %7, %20 : vector<1x1xf32>
    %22 = arith.mulf %8, %20 : vector<1x1xf32>
    %23 = arith.mulf %9, %20 : vector<1x1xf32>
    %24 = arith.mulf %10, %20 : vector<1x1xf32>
    %25 = arith.mulf %23, %23 : vector<1x1xf32>
    %26 = arith.mulf %24, %24 : vector<1x1xf32>
    %27 = arith.addf %25, %26 : vector<1x1xf32>
    %cst_3 = arith.constant 2.000000e+00 : f32
    %28 = vector.broadcast %cst_3 : f32 to vector<1x1xf32>
    %29 = arith.mulf %28, %27 : vector<1x1xf32>
    %cst_4 = arith.constant 1.000000e+00 : f32
    %30 = vector.broadcast %cst_4 : f32 to vector<1x1xf32>
    %31 = arith.subf %30, %29 : vector<1x1xf32>
    %32 = arith.mulf %22, %23 : vector<1x1xf32>
    %33 = arith.mulf %21, %24 : vector<1x1xf32>
    %34 = arith.subf %32, %33 : vector<1x1xf32>
    %cst_5 = arith.constant 2.000000e+00 : f32
    %35 = vector.broadcast %cst_5 : f32 to vector<1x1xf32>
    %36 = arith.mulf %35, %34 : vector<1x1xf32>
    %37 = arith.mulf %22, %24 : vector<1x1xf32>
    %38 = arith.mulf %21, %23 : vector<1x1xf32>
    %39 = arith.addf %37, %38 : vector<1x1xf32>
    %cst_6 = arith.constant 2.000000e+00 : f32
    %40 = vector.broadcast %cst_6 : f32 to vector<1x1xf32>
    %41 = arith.mulf %40, %39 : vector<1x1xf32>
    %42 = arith.mulf %22, %23 : vector<1x1xf32>
    %43 = arith.mulf %21, %24 : vector<1x1xf32>
    %44 = arith.addf %42, %43 : vector<1x1xf32>
    %cst_7 = arith.constant 2.000000e+00 : f32
    %45 = vector.broadcast %cst_7 : f32 to vector<1x1xf32>
    %46 = arith.mulf %45, %44 : vector<1x1xf32>
    %47 = arith.mulf %22, %22 : vector<1x1xf32>
    %48 = arith.mulf %24, %24 : vector<1x1xf32>
    %49 = arith.addf %47, %48 : vector<1x1xf32>
    %cst_8 = arith.constant 2.000000e+00 : f32
    %50 = vector.broadcast %cst_8 : f32 to vector<1x1xf32>
    %51 = arith.mulf %50, %49 : vector<1x1xf32>
    %cst_9 = arith.constant 1.000000e+00 : f32
    %52 = vector.broadcast %cst_9 : f32 to vector<1x1xf32>
    %53 = arith.subf %52, %51 : vector<1x1xf32>
    %54 = arith.mulf %23, %24 : vector<1x1xf32>
    %55 = arith.mulf %21, %22 : vector<1x1xf32>
    %56 = arith.subf %54, %55 : vector<1x1xf32>
    %cst_10 = arith.constant 2.000000e+00 : f32
    %57 = vector.broadcast %cst_10 : f32 to vector<1x1xf32>
    %58 = arith.mulf %57, %56 : vector<1x1xf32>
    %59 = arith.mulf %22, %24 : vector<1x1xf32>
    %60 = arith.mulf %21, %23 : vector<1x1xf32>
    %61 = arith.subf %59, %60 : vector<1x1xf32>
    %cst_11 = arith.constant 2.000000e+00 : f32
    %62 = vector.broadcast %cst_11 : f32 to vector<1x1xf32>
    %63 = arith.mulf %62, %61 : vector<1x1xf32>
    %64 = arith.mulf %23, %24 : vector<1x1xf32>
    %65 = arith.mulf %21, %22 : vector<1x1xf32>
    %66 = arith.addf %64, %65 : vector<1x1xf32>
    %cst_12 = arith.constant 2.000000e+00 : f32
    %67 = vector.broadcast %cst_12 : f32 to vector<1x1xf32>
    %68 = arith.mulf %67, %66 : vector<1x1xf32>
    %69 = arith.mulf %22, %22 : vector<1x1xf32>
    %70 = arith.mulf %23, %23 : vector<1x1xf32>
    %71 = arith.addf %69, %70 : vector<1x1xf32>
    %cst_13 = arith.constant 2.000000e+00 : f32
    %72 = vector.broadcast %cst_13 : f32 to vector<1x1xf32>
    %73 = arith.mulf %72, %71 : vector<1x1xf32>
    %cst_14 = arith.constant 1.000000e+00 : f32
    %74 = vector.broadcast %cst_14 : f32 to vector<1x1xf32>
    %75 = arith.subf %74, %73 : vector<1x1xf32>
    %76 = vector.extract_strided_slice %1 {offsets = [0, 0], sizes = [1, 128], strides = [1, 1]} : vector<3x128xf32> to vector<1x128xf32>
    %77 = vector.extract_strided_slice %1 {offsets = [1, 0], sizes = [1, 128], strides = [1, 1]} : vector<3x128xf32> to vector<1x128xf32>
    %78 = vector.extract_strided_slice %1 {offsets = [2, 0], sizes = [1, 128], strides = [1, 1]} : vector<3x128xf32> to vector<1x128xf32>
    %79 = vector.broadcast %31 : vector<1x1xf32> to vector<1x128xf32>
    %80 = arith.mulf %79, %76 : vector<1x128xf32>
    %81 = vector.broadcast %36 : vector<1x1xf32> to vector<1x128xf32>
    %82 = arith.mulf %81, %77 : vector<1x128xf32>
    %83 = arith.addf %80, %82 : vector<1x128xf32>
    %84 = vector.broadcast %41 : vector<1x1xf32> to vector<1x128xf32>
    %85 = arith.mulf %84, %78 : vector<1x128xf32>
    %86 = arith.addf %83, %85 : vector<1x128xf32>
    %87 = vector.broadcast %4 : vector<1x1xf32> to vector<1x128xf32>
    %88 = arith.addf %86, %87 : vector<1x128xf32>
    %89 = vector.broadcast %46 : vector<1x1xf32> to vector<1x128xf32>
    %90 = arith.mulf %89, %76 : vector<1x128xf32>
    %91 = vector.broadcast %53 : vector<1x1xf32> to vector<1x128xf32>
    %92 = arith.mulf %91, %77 : vector<1x128xf32>
    %93 = arith.addf %90, %92 : vector<1x128xf32>
    %94 = vector.broadcast %58 : vector<1x1xf32> to vector<1x128xf32>
    %95 = arith.mulf %94, %78 : vector<1x128xf32>
    %96 = arith.addf %93, %95 : vector<1x128xf32>
    %97 = vector.broadcast %5 : vector<1x1xf32> to vector<1x128xf32>
    %98 = arith.addf %96, %97 : vector<1x128xf32>
    %99 = vector.broadcast %63 : vector<1x1xf32> to vector<1x128xf32>
    %100 = arith.mulf %99, %76 : vector<1x128xf32>
    %101 = vector.broadcast %68 : vector<1x1xf32> to vector<1x128xf32>
    %102 = arith.mulf %101, %77 : vector<1x128xf32>
    %103 = arith.addf %100, %102 : vector<1x128xf32>
    %104 = vector.broadcast %75 : vector<1x1xf32> to vector<1x128xf32>
    %105 = arith.mulf %104, %78 : vector<1x128xf32>
    %106 = arith.addf %103, %105 : vector<1x128xf32>
    %107 = vector.broadcast %6 : vector<1x1xf32> to vector<1x128xf32>
    %108 = arith.addf %106, %107 : vector<1x128xf32>
    %109 = tpu.concatenate %88, %98, %108 in 0 : vector<1x128xf32>, vector<1x128xf32>, vector<1x128xf32> -> vector<3x128xf32>
    %c0_15 = arith.constant 0 : index
    %c0_16 = arith.constant 0 : index
    %c0_17 = arith.constant 0 : index
    %110 = vector.load %arg15[%c0_15, %c0_16, %c0_17] : memref<1x3x128xf32, #tpu.memory_space<vmem>>, vector<1x3x128xf32>
    %111 = vector.shape_cast %110 : vector<1x3x128xf32> to vector<3x128xf32>
    %112 = vector.shape_cast %109 : vector<3x128xf32> to vector<1x3x128xf32>
    tpu.vector_store %arg15[%c0_15, %c0_16, %c0_17], %112 {strides = array<i32>} : memref<1x3x128xf32, #tpu.memory_space<vmem>>, vector<1x3x128xf32>,
    %113 = vector.extract_strided_slice %1 {offsets = [0, 0], sizes = [1, 128], strides = [1, 1]} : vector<3x128xf32> to vector<1x128xf32>
    %114 = vector.extract_strided_slice %1 {offsets = [1, 0], sizes = [1, 128], strides = [1, 1]} : vector<3x128xf32> to vector<1x128xf32>
    %115 = vector.extract_strided_slice %1 {offsets = [2, 0], sizes = [1, 128], strides = [1, 1]} : vector<3x128xf32> to vector<1x128xf32>
    %c0_18 = arith.constant 0 : index
    %c0_19 = arith.constant 0 : index
    %116 = vector.load %arg5[%c0_18, %c0_19] : memref<64x3xf32, #tpu.memory_space<vmem>>, vector<64x3xf32>
    %117 = vector.extract_strided_slice %116 {offsets = [0, 0], sizes = [64, 1], strides = [1, 1]} : vector<64x3xf32> to vector<64x1xf32>
    %118 = vector.broadcast %117 : vector<64x1xf32> to vector<64x128xf32>
    %119 = vector.broadcast %113 : vector<1x128xf32> to vector<64x128xf32>
    %120 = arith.mulf %118, %119 : vector<64x128xf32>
    %121 = vector.extract_strided_slice %116 {offsets = [0, 1], sizes = [64, 1], strides = [1, 1]} : vector<64x3xf32> to vector<64x1xf32>
    %122 = vector.broadcast %121 : vector<64x1xf32> to vector<64x128xf32>
    %123 = vector.broadcast %114 : vector<1x128xf32> to vector<64x128xf32>
    %124 = arith.mulf %122, %123 : vector<64x128xf32>
    %125 = arith.addf %120, %124 : vector<64x128xf32>
    %126 = vector.extract_strided_slice %116 {offsets = [0, 2], sizes = [64, 1], strides = [1, 1]} : vector<64x3xf32> to vector<64x1xf32>
    %127 = vector.broadcast %126 : vector<64x1xf32> to vector<64x128xf32>
    %128 = vector.broadcast %115 : vector<1x128xf32> to vector<64x128xf32>
    %129 = arith.mulf %127, %128 : vector<64x128xf32>
    %130 = arith.addf %125, %129 : vector<64x128xf32>
    %c0_20 = arith.constant 0 : index
    %c0_21 = arith.constant 0 : index
    %131 = vector.load %arg6[%c0_20, %c0_21] : memref<64x1xf32, #tpu.memory_space<vmem>>, vector<64x1xf32>
    %132 = vector.broadcast %131 : vector<64x1xf32> to vector<64x128xf32>
    %133 = arith.addf %130, %132 : vector<64x128xf32>
    %cst_22 = arith.constant 0.000000e+00 : f32
    %134 = vector.broadcast %cst_22 : f32 to vector<64x128xf32>
    %135 = arith.maximumf %133, %134 : vector<64x128xf32>
    %c0_23 = arith.constant 0 : index
    %c0_24 = arith.constant 0 : index
    %136 = vector.load %arg7[%c0_23, %c0_24] : memref<128x64xf32, #tpu.memory_space<vmem>>, vector<128x64xf32>
    %cst_25 = arith.constant dense<0.000000e+00> : vector<128x128xf32>
    %137 = tpu.matmul %136, %135, %cst_25 {dimension_numbers = #tpu.dot_dimension_numbers<[1], [0], [0], [1], [0, 0, 1, 1], [], []>} : vector<128x64xf32>, vector<64x128xf32>, vector<128x128xf32> -> vector<128x128xf32>
    %c0_26 = arith.constant 0 : index
    %c0_27 = arith.constant 0 : index
    %138 = vector.load %arg8[%c0_26, %c0_27] : memref<128x1xf32, #tpu.memory_space<vmem>>, vector<128x1xf32>
    %139 = vector.broadcast %138 : vector<128x1xf32> to vector<128x128xf32>
    %140 = arith.addf %137, %139 : vector<128x128xf32>
    %cst_28 = arith.constant 0.000000e+00 : f32
    %141 = vector.broadcast %cst_28 : f32 to vector<128x128xf32>
    %142 = arith.maximumf %140, %141 : vector<128x128xf32>
    %c0_29 = arith.constant 0 : index
    %c0_30 = arith.constant 0 : index
    %143 = vector.load %arg9[%c0_29, %c0_30] : memref<256x128xbf16, #tpu.memory_space<vmem>>, vector<256x128xbf16>
    %144 = arith.truncf %142 : vector<128x128xf32> to vector<128x128xbf16>
    %cst_31 = arith.constant dense<0.000000e+00> : vector<256x128xf32>
    %145 = tpu.matmul %143, %144, %cst_31 {dimension_numbers = #tpu.dot_dimension_numbers<[1], [0], [0], [1], [0, 0, 1, 1], [], []>} : vector<256x128xbf16>, vector<128x128xbf16>, vector<256x128xf32> -> vector<256x128xf32>
    %c0_32 = arith.constant 0 : index
    %c0_33 = arith.constant 0 : index
    %146 = vector.load %arg10[%c0_32, %c0_33] : memref<256x1xf32, #tpu.memory_space<vmem>>, vector<256x1xf32>
    %147 = vector.broadcast %146 : vector<256x1xf32> to vector<256x128xf32>
    %148 = arith.addf %145, %147 : vector<256x128xf32>
    %cst_34 = arith.constant 0.000000e+00 : f32
    %149 = vector.broadcast %cst_34 : f32 to vector<256x128xf32>
    %150 = arith.maximumf %148, %149 : vector<256x128xf32>
    %c0_i32 = arith.constant 0 : i32
    %151 = arith.cmpi eq, %arg1, %c0_i32 : i32
    %152 = arith.extui %151 : i1 to i32
    %c0_i32_35 = arith.constant 0 : i32
    %153 = arith.cmpi ne, %152, %c0_i32_35 : i32
    scf.if %153 {
      %cst_43 = arith.constant 0xFF800000 : f32
      %162 = vector.broadcast %cst_43 : f32 to vector<256x1xf32>
      %c0_44 = arith.constant 0 : index
      %c0_45 = arith.constant 0 : index
      %163 = vector.load %arg18[%c0_44, %c0_45] : memref<256x1xf32, #tpu.memory_space<vmem>>, vector<256x1xf32>
      tpu.vector_store %arg18[%c0_44, %c0_45], %162 {strides = array<i32>} : memref<256x1xf32, #tpu.memory_space<vmem>>, vector<256x1xf32>,
    } else {
    }
    %c0_36 = arith.constant 0 : index
    %c0_37 = arith.constant 0 : index
    %154 = vector.load %arg18[%c0_36, %c0_37] : memref<256x1xf32, #tpu.memory_space<vmem>>, vector<256x1xf32>
    %cst_38 = arith.constant dense<0xFF800000> : vector<256xf32>
    %155 = vector.multi_reduction <maximumf>, %150, %cst_38 [1] : vector<256x128xf32> to vector<256xf32>
    %156 = vector.shape_cast %155 : vector<256xf32> to vector<256x1xf32>
    %157 = arith.maximumf %154, %156 : vector<256x1xf32>
    %c0_39 = arith.constant 0 : index
    %c0_40 = arith.constant 0 : index
    %158 = vector.load %arg18[%c0_39, %c0_40] : memref<256x1xf32, #tpu.memory_space<vmem>>, vector<256x1xf32>
    tpu.vector_store %arg18[%c0_39, %c0_40], %157 {strides = array<i32>} : memref<256x1xf32, #tpu.memory_space<vmem>>, vector<256x1xf32>,
    %c0_i32_41 = arith.constant 0 : i32
    %159 = arith.cmpi eq, %arg1, %c0_i32_41 : i32
    %160 = arith.extui %159 : i1 to i32
    %c0_i32_42 = arith.constant 0 : i32
    %161 = arith.cmpi ne, %160, %c0_i32_42 : i32
    scf.if %161 {
      %c0_43 = arith.constant 0 : index
      %c0_44 = arith.constant 0 : index
      %162 = vector.load %arg18[%c0_43, %c0_44] : memref<256x1xf32, #tpu.memory_space<vmem>>, vector<256x1xf32>
      %c0_45 = arith.constant 0 : index
      %c0_46 = arith.constant 0 : index
      %163 = vector.load %arg11[%c0_45, %c0_46] : memref<256x128xf32, #tpu.memory_space<vmem>>, vector<256x128xf32>
      %164 = vector.broadcast %162 : vector<256x1xf32> to vector<256x128xf32>
      %165 = arith.mulf %163, %164 : vector<256x128xf32>
      %cst_47 = arith.constant dense<0.000000e+00> : vector<128xf32>
      %166 = vector.multi_reduction <add>, %165, %cst_47 [0] : vector<256x128xf32> to vector<128xf32>
      %167 = vector.shape_cast %166 : vector<128xf32> to vector<1x128xf32>
      %c0_48 = arith.constant 0 : index
      %c0_49 = arith.constant 0 : index
      %168 = vector.load %arg12[%c0_48, %c0_49] : memref<1x128xf32, #tpu.memory_space<vmem>>, vector<1x128xf32>
      %169 = arith.addf %167, %168 : vector<1x128xf32>
      %cst_50 = arith.constant 0.000000e+00 : f32
      %170 = vector.broadcast %cst_50 : f32 to vector<1x128xf32>
      %171 = arith.maximumf %169, %170 : vector<1x128xf32>
      %c0_51 = arith.constant 0 : index
      %c0_52 = arith.constant 0 : index
      %172 = vector.load %arg13[%c0_51, %c0_52] : memref<7x128xf32, #tpu.memory_space<vmem>>, vector<7x128xf32>
      %173 = vector.broadcast %171 : vector<1x128xf32> to vector<7x128xf32>
      %174 = arith.mulf %172, %173 : vector<7x128xf32>
      %cst_53 = arith.constant dense<0.000000e+00> : vector<7xf32>
      %175 = vector.multi_reduction <add>, %174, %cst_53 [1] : vector<7x128xf32> to vector<7xf32>
      %176 = vector.shape_cast %175 : vector<7xf32> to vector<7x1xf32>
      %c0_54 = arith.constant 0 : index
      %c0_55 = arith.constant 0 : index
      %177 = vector.load %arg14[%c0_54, %c0_55] : memref<7x1xf32, #tpu.memory_space<vmem>>, vector<7x1xf32>
      %178 = arith.addf %176, %177 : vector<7x1xf32>
      %c0_56 = arith.constant 0 : index
      %c0_57 = arith.constant 0 : index
      %c0_58 = arith.constant 0 : index
      %179 = vector.load %arg16[%c0_56, %c0_57, %c0_58] : memref<1x7x1xf32, #tpu.memory_space<vmem>>, vector<1x7x1xf32>
      %180 = vector.shape_cast %179 : vector<1x7x1xf32> to vector<7x1xf32>
      %181 = vector.shape_cast %178 : vector<7x1xf32> to vector<1x7x1xf32>
      tpu.vector_store %arg16[%c0_56, %c0_57, %c0_58], %181 {strides = array<i32>} : memref<1x7x1xf32, #tpu.memory_space<vmem>>, vector<1x7x1xf32>,
      %182 = arith.index_cast %arg0 : i32 to index
      %c0_59 = arith.constant 0 : index
      %183 = vector.load %arg4[%182, %c0_59] : memref<2x7xf32, #tpu.memory_space<vmem>>, vector<1x7xf32>
      %184 = vector.extract_strided_slice %178 {offsets = [0, 0], sizes = [1, 1], strides = [1, 1]} : vector<7x1xf32> to vector<1x1xf32>
      %185 = vector.extract_strided_slice %183 {offsets = [0, 0], sizes = [1, 1], strides = [1, 1]} : vector<1x7xf32> to vector<1x1xf32>
      %186 = arith.addf %184, %185 : vector<1x1xf32>
      %187 = vector.extract_strided_slice %178 {offsets = [1, 0], sizes = [1, 1], strides = [1, 1]} : vector<7x1xf32> to vector<1x1xf32>
      %188 = vector.extract_strided_slice %183 {offsets = [0, 1], sizes = [1, 1], strides = [1, 1]} : vector<1x7xf32> to vector<1x1xf32>
      %189 = arith.addf %187, %188 : vector<1x1xf32>
      %190 = vector.extract_strided_slice %178 {offsets = [2, 0], sizes = [1, 1], strides = [1, 1]} : vector<7x1xf32> to vector<1x1xf32>
      %191 = vector.extract_strided_slice %183 {offsets = [0, 2], sizes = [1, 1], strides = [1, 1]} : vector<1x7xf32> to vector<1x1xf32>
      %192 = arith.addf %190, %191 : vector<1x1xf32>
      %193 = vector.extract_strided_slice %178 {offsets = [3, 0], sizes = [1, 1], strides = [1, 1]} : vector<7x1xf32> to vector<1x1xf32>
      %194 = vector.extract_strided_slice %178 {offsets = [4, 0], sizes = [1, 1], strides = [1, 1]} : vector<7x1xf32> to vector<1x1xf32>
      %195 = vector.extract_strided_slice %178 {offsets = [5, 0], sizes = [1, 1], strides = [1, 1]} : vector<7x1xf32> to vector<1x1xf32>
      %196 = vector.extract_strided_slice %178 {offsets = [6, 0], sizes = [1, 1], strides = [1, 1]} : vector<7x1xf32> to vector<1x1xf32>
      %197 = vector.extract_strided_slice %183 {offsets = [0, 3], sizes = [1, 1], strides = [1, 1]} : vector<1x7xf32> to vector<1x1xf32>
      %198 = vector.extract_strided_slice %183 {offsets = [0, 4], sizes = [1, 1], strides = [1, 1]} : vector<1x7xf32> to vector<1x1xf32>
      %199 = vector.extract_strided_slice %183 {offsets = [0, 5], sizes = [1, 1], strides = [1, 1]} : vector<1x7xf32> to vector<1x1xf32>
      %200 = vector.extract_strided_slice %183 {offsets = [0, 6], sizes = [1, 1], strides = [1, 1]} : vector<1x7xf32> to vector<1x1xf32>
      %201 = arith.mulf %193, %197 : vector<1x1xf32>
      %202 = arith.mulf %194, %198 : vector<1x1xf32>
      %203 = arith.subf %201, %202 : vector<1x1xf32>
      %204 = arith.mulf %195, %199 : vector<1x1xf32>
      %205 = arith.subf %203, %204 : vector<1x1xf32>
      %206 = arith.mulf %196, %200 : vector<1x1xf32>
      %207 = arith.subf %205, %206 : vector<1x1xf32>
      %208 = arith.mulf %193, %198 : vector<1x1xf32>
      %209 = arith.mulf %194, %197 : vector<1x1xf32>
      %210 = arith.addf %208, %209 : vector<1x1xf32>
      %211 = arith.mulf %195, %200 : vector<1x1xf32>
      %212 = arith.addf %210, %211 : vector<1x1xf32>
      %213 = arith.mulf %196, %199 : vector<1x1xf32>
      %214 = arith.subf %212, %213 : vector<1x1xf32>
      %215 = arith.mulf %193, %199 : vector<1x1xf32>
      %216 = arith.mulf %194, %200 : vector<1x1xf32>
      %217 = arith.subf %215, %216 : vector<1x1xf32>
      %218 = arith.mulf %195, %197 : vector<1x1xf32>
      %219 = arith.addf %217, %218 : vector<1x1xf32>
      %220 = arith.mulf %196, %198 : vector<1x1xf32>
      %221 = arith.addf %219, %220 : vector<1x1xf32>
      %222 = arith.mulf %193, %200 : vector<1x1xf32>
      %223 = arith.mulf %194, %199 : vector<1x1xf32>
      %224 = arith.addf %222, %223 : vector<1x1xf32>
      %225 = arith.mulf %195, %198 : vector<1x1xf32>
      %226 = arith.subf %224, %225 : vector<1x1xf32>
      %227 = arith.mulf %196, %197 : vector<1x1xf32>
      %228 = arith.addf %226, %227 : vector<1x1xf32>
      %229 = tpu.concatenate %186, %189, %192, %207, %214, %221, %228 in 0 : vector<1x1xf32>, vector<1x1xf32>, vector<1x1xf32>, vector<1x1xf32>, vector<1x1xf32>, vector<1x1xf32>, vector<1x1xf32> -> vector<7x1xf32>
      %c0_60 = arith.constant 0 : index
      %c0_61 = arith.constant 0 : index
      %c0_62 = arith.constant 0 : index
      %230 = vector.load %arg17[%c0_60, %c0_61, %c0_62] : memref<1x7x1xf32, #tpu.memory_space<vmem>>, vector<1x7x1xf32>
      %231 = vector.shape_cast %230 : vector<1x7x1xf32> to vector<7x1xf32>
      %232 = vector.shape_cast %229 : vector<7x1xf32> to vector<1x7x1xf32>
      tpu.vector_store %arg17[%c0_60, %c0_61, %c0_62], %232 {strides = array<i32>} : memref<1x7x1xf32, #tpu.memory_space<vmem>>, vector<1x7x1xf32>,
    } else {
    }
    return
  }
  func.func @transform_0(%arg0: i32, %arg1: i32) -> (i32, i32, i32) {
    %c0_i32 = arith.constant 0 : i32
    %c0_i32_0 = arith.constant 0 : i32
    return %arg0, %c0_i32, %arg1 : i32, i32, i32
  }
  func.func @transform_1(%arg0: i32, %arg1: i32) -> (i32, i32) {
    %c0_i32 = arith.constant 0 : i32
    %c0_i32_0 = arith.constant 0 : i32
    %c0_i32_1 = arith.constant 0 : i32
    return %c0_i32, %c0_i32_0 : i32, i32
  }
  func.func @transform_2(%arg0: i32, %arg1: i32) -> (i32, i32) {
    %c0_i32 = arith.constant 0 : i32
    %c0_i32_0 = arith.constant 0 : i32
    %c0_i32_1 = arith.constant 0 : i32
    return %c0_i32, %c0_i32_0 : i32, i32
  }
  func.func @transform_3(%arg0: i32, %arg1: i32) -> (i32, i32) {
    %c0_i32 = arith.constant 0 : i32
    %c0_i32_0 = arith.constant 0 : i32
    %c0_i32_1 = arith.constant 0 : i32
    return %c0_i32, %c0_i32_0 : i32, i32
  }
  func.func @transform_4(%arg0: i32, %arg1: i32) -> (i32, i32) {
    %c0_i32 = arith.constant 0 : i32
    %c0_i32_0 = arith.constant 0 : i32
    %c0_i32_1 = arith.constant 0 : i32
    return %c0_i32, %c0_i32_0 : i32, i32
  }
  func.func @transform_5(%arg0: i32, %arg1: i32) -> (i32, i32) {
    %c0_i32 = arith.constant 0 : i32
    %c0_i32_0 = arith.constant 0 : i32
    %c0_i32_1 = arith.constant 0 : i32
    return %c0_i32, %c0_i32_0 : i32, i32
  }
  func.func @transform_6(%arg0: i32, %arg1: i32) -> (i32, i32) {
    %c0_i32 = arith.constant 0 : i32
    %c0_i32_0 = arith.constant 0 : i32
    %c0_i32_1 = arith.constant 0 : i32
    return %c0_i32, %c0_i32_0 : i32, i32
  }
  func.func @transform_7(%arg0: i32, %arg1: i32) -> (i32, i32) {
    %c0_i32 = arith.constant 0 : i32
    %c0_i32_0 = arith.constant 0 : i32
    %c0_i32_1 = arith.constant 0 : i32
    return %c0_i32, %c0_i32_0 : i32, i32
  }
  func.func @transform_8(%arg0: i32, %arg1: i32) -> (i32, i32) {
    %c0_i32 = arith.constant 0 : i32
    %c0_i32_0 = arith.constant 0 : i32
    %c0_i32_1 = arith.constant 0 : i32
    return %c0_i32, %c0_i32_0 : i32, i32
  }
  func.func @transform_9(%arg0: i32, %arg1: i32) -> (i32, i32) {
    %c0_i32 = arith.constant 0 : i32
    %c0_i32_0 = arith.constant 0 : i32
    %c0_i32_1 = arith.constant 0 : i32
    return %c0_i32, %c0_i32_0 : i32, i32
  }
  func.func @transform_10(%arg0: i32, %arg1: i32) -> (i32, i32) {
    %c0_i32 = arith.constant 0 : i32
    %c0_i32_0 = arith.constant 0 : i32
    %c0_i32_1 = arith.constant 0 : i32
    return %c0_i32, %c0_i32_0 : i32, i32
  }
  func.func @transform_11(%arg0: i32, %arg1: i32) -> (i32, i32) {
    %c0_i32 = arith.constant 0 : i32
    %c0_i32_0 = arith.constant 0 : i32
    %c0_i32_1 = arith.constant 0 : i32
    return %c0_i32, %c0_i32_0 : i32, i32
  }
  func.func @transform_12(%arg0: i32, %arg1: i32) -> (i32, i32) {
    %c0_i32 = arith.constant 0 : i32
    %c0_i32_0 = arith.constant 0 : i32
    %c0_i32_1 = arith.constant 0 : i32
    return %c0_i32, %c0_i32_0 : i32, i32
  }
  func.func @transform_13(%arg0: i32, %arg1: i32) -> (i32, i32, i32) {
    %c0_i32 = arith.constant 0 : i32
    %c0_i32_0 = arith.constant 0 : i32
    return %arg0, %c0_i32, %arg1 : i32, i32, i32
  }
  func.func @transform_14(%arg0: i32, %arg1: i32) -> (i32, i32, i32) {
    %c0_i32 = arith.constant 0 : i32
    %c0_i32_0 = arith.constant 0 : i32
    %c0_i32_1 = arith.constant 0 : i32
    return %arg0, %c0_i32, %c0_i32_0 : i32, i32, i32
  }
  func.func @transform_15(%arg0: i32, %arg1: i32) -> (i32, i32, i32) {
    %c0_i32 = arith.constant 0 : i32
    %c0_i32_0 = arith.constant 0 : i32
    %c0_i32_1 = arith.constant 0 : i32
    return %arg0, %c0_i32, %c0_i32_0 : i32, i32, i32
  }
}

</mosaic_0001>

<llo_original>
// kernel: tpu_custom_call.1
$region0: #{tpu_custom_call.1}
  #allocation0 [shape = 'u32[]', space=smem, size = 0x4, offset = 0x4, fixed_abs, tag = 'smem constant byte address 0x4 - core index']
  #allocation1 [shape = 'u32[72,128]{1,0:T(1,128)}', space=vmem, size = 0x9000, scoped, tag = 'internal scratch']
  #allocation2 [shape = 'f32[256,1]{1,0:T(8,128)}', space=vmem, size = 0x20000, scoped, tag = 'scratch operand']
  %s0 = inlined_call_operand.vmem [shape: f32[2,3,128], index: 0, kind: input, shape index: {}]
  %s1 = inlined_call_operand.vmem [shape: f32[2,7], index: 1, kind: input, shape index: {}]
  %s2 = inlined_call_operand.vmem [shape: f32[2,7], index: 2, kind: input, shape index: {}]
  %s3 = inlined_call_operand.vmem [shape: f32[64,3], index: 3, kind: input, shape index: {}]
  %s4 = inlined_call_operand.vmem [shape: f32[64,1], index: 4, kind: input, shape index: {}]
  %s5 = inlined_call_operand.vmem [shape: f32[128,64], index: 5, kind: input, shape index: {}]
  %s6 = inlined_call_operand.vmem [shape: f32[128,1], index: 6, kind: input, shape index: {}]
  %s7 = inlined_call_operand.vmem [shape: bf16[256,128], index: 7, kind: input, shape index: {}]
  %s8 = inlined_call_operand.vmem [shape: f32[256,1], index: 8, kind: input, shape index: {}]
  %s9 = inlined_call_operand.vmem [shape: f32[256,128], index: 9, kind: input, shape index: {}]
  %s10 = inlined_call_operand.vmem [shape: f32[1,128], index: 10, kind: input, shape index: {}]
  %s11 = inlined_call_operand.vmem [shape: f32[7,128], index: 11, kind: input, shape index: {}]
  %s12 = inlined_call_operand.vmem [shape: f32[7,1], index: 12, kind: input, shape index: {}]
  %s13 = inlined_call_operand.vmem [shape: f32[2,3,128], index: 13, kind: output, shape index: {0}]
  %s14 = inlined_call_operand.vmem [shape: f32[2,7,1], index: 14, kind: output, shape index: {1}]
  %s15 = inlined_call_operand.vmem [shape: f32[2,7,1], index: 15, kind: output, shape index: {2}]
  %16 = xla_tuple %s13, %s14, %s15
  %s17 = sld [smem:[#allocation0]]
  $region109: #{tpu_custom_call.1} parent=0
    _
  %s19 = ssub.s32 1, %s17
  %s20 = scalar_select 0, %s19, %s17
  loop: start=0, step=1, limit=4
  $region2: #{tpu_custom_call.1} parent=0 // loop_pre_header
    _
  $region3: #{tpu_custom_call.1} parent=0 // loop_header
    %s22 = sphi 0, %s26
    %p23 = scmp.ge.s32.totalorder %s22, 4
    %s29 = sphi 0, %s41
    %s30 = sphi 0, %s37
    %s31 = sphi 0, %s29
    %s32 = sphi 0, %s30
    %s33 = sphi 0, %s31
    %s34 = sphi 0, %s32
    %s46 = sphi 0, %s48
    %s49 = sphi 0, %s46
    %s50 = sphi 0, %s49
    %s66 = sphi 0, %s50
    %s70 = sphi 0, %s70
    %s72 = sphi 0, %s70
    %s73 = sphi 0, %s72
    %s87 = sphi 0, %s73
    %s91 = sphi 0, %s91
    %s93 = sphi 0, %s91
    %s94 = sphi 0, %s93
    %s108 = sphi 0, %s94
    %s112 = sphi 0, %s112
    %s114 = sphi 0, %s112
    %s115 = sphi 0, %s114
    %s129 = sphi 0, %s115
    %s133 = sphi 0, %s133
    %s135 = sphi 0, %s133
    %s136 = sphi 0, %s135
    %s150 = sphi 0, %s136
    %s154 = sphi 0, %s154
    %s156 = sphi 0, %s154
    %s157 = sphi 0, %s156
    %s171 = sphi 0, %s157
    %s175 = sphi 0, %s175
    %s177 = sphi 0, %s175
    %s178 = sphi 0, %s177
    %s192 = sphi 0, %s178
    %s196 = sphi 0, %s196
    %s198 = sphi 0, %s196
    %s199 = sphi 0, %s198
    %s213 = sphi 0, %s199
    %s217 = sphi 0, %s217
    %s219 = sphi 0, %s217
    %s220 = sphi 0, %s219
    %s234 = sphi 0, %s220
    %s238 = sphi 0, %s238
    %s240 = sphi 0, %s238
    %s241 = sphi 0, %s240
    %s255 = sphi 0, %s241
    %s259 = sphi 0, %s259
    %s261 = sphi 0, %s259
    %s262 = sphi 0, %s261
    %s276 = sphi 0, %s262
    %s280 = sphi 0, %s280
    %s282 = sphi 0, %s280
    %s283 = sphi 0, %s282
    %s297 = sphi 0, %s283
    %s301 = sphi 0, %s301
    %s303 = sphi 0, %s301
    %s304 = sphi 0, %s303
    %s318 = sphi 0, %s304
    %s326 = sphi 0, %s328
    %s329 = sphi 0, %s326
    %s330 = sphi 0, %s329
    %s346 = sphi 0, %s330
    %s352 = sphi 0, %s354
    %s355 = sphi 0, %s352
    %s356 = sphi 0, %s355
    %s372 = sphi 0, %s356
    %s378 = sphi 0, %s380
    %s381 = sphi 0, %s378
    %s382 = sphi 0, %s381
    %s398 = sphi 0, %s382
  $region4: #{tpu_custom_call.1} parent=0 // loop_header_branch
    %25 = sbr.rel (%p23) target = $region8
  $region5: #{tpu_custom_call.1} parent=0 // loop_body
    %s27 = ssub.s32 %s22, 1
    %s28 = ssub.s32 %s22, 2
    %s35 = sadd.s32 1, %s30
    %p36 = scmp.ge.s32.totalorder %s35, 1
    %s37 = scalar_select %p36, 0, %s35
    %s38 = sadd.s32 1, %s29
    %s39 = scalar_select %p36, %s38, %s29
    %p40 = scmp.ge.s32.totalorder %s39, 2
    %s41 = scalar_select %p40, 0, %s39
    %s42 = ssub.s32 %s29, %s41
    %s43 = ssub.s32 %s30, %s37
    %s44 = sor.u32 %s42, %s43
    %p45 = scmp.eq.s32.totalorder %s44, 0
    %s47 = sadd.s32 %s46, 1
    %s48 = scalar_select %p45, %s46, %s47
    %p51 = pneg %p45
    %p52 = scmp.eq.s32.totalorder %s22, 1
    %p53 = por %p51, %p52
    %p54 = scmp.ne.s32.totalorder %s46, %s49
    %p55 = scmp.eq.s32.totalorder %s22, 0
    %p56 = por %p54, %p55
    %p57 = scmp.ne.s32.totalorder %s46, %s49
    %p58 = scmp.eq.s32.totalorder %s27, 1
    %p59 = por %p57, %p58
    %p60 = scmp.ne.s32.totalorder %s49, %s50
    %p61 = scmp.eq.s32.totalorder %s27, 0
    %p62 = por %p60, %p61
    %p63 = scmp.ne.s32.totalorder %s49, %s50
    %p64 = scmp.eq.s32.totalorder %s28, 1
    %p65 = por %p63, %p64
    %p67 = scmp.ne.s32.totalorder %s50, %s66
    %p68 = scmp.eq.s32.totalorder %s28, 0
    %p69 = por %p67, %p68
    %s71 = sadd.s32 %s70, 1
    %p74 = scmp.eq.s32.totalorder %s22, 1
    %p75 = scmp.ne.s32.totalorder %s70, %s72
    %p76 = scmp.eq.s32.totalorder %s22, 0
    %p77 = por %p75, %p76
    %p78 = scmp.ne.s32.totalorder %s70, %s72
    %p79 = scmp.eq.s32.totalorder %s27, 1
    %p80 = por %p78, %p79
    %p81 = scmp.ne.s32.totalorder %s72, %s73
    %p82 = scmp.eq.s32.totalorder %s27, 0
    %p83 = por %p81, %p82
    %p84 = scmp.ne.s32.totalorder %s72, %s73
    %p85 = scmp.eq.s32.totalorder %s28, 1
    %p86 = por %p84, %p85
    %p88 = scmp.ne.s32.totalorder %s73, %s87
    %p89 = scmp.eq.s32.totalorder %s28, 0
    %p90 = por %p88, %p89
    %s92 = sadd.s32 %s91, 1
    %p95 = scmp.eq.s32.totalorder %s22, 1
    %p96 = scmp.ne.s32.totalorder %s91, %s93
    %p97 = scmp.eq.s32.totalorder %s22, 0
    %p98 = por %p96, %p97
    %p99 = scmp.ne.s32.totalorder %s91, %s93
    %p100 = scmp.eq.s32.totalorder %s27, 1
    %p101 = por %p99, %p100
    %p102 = scmp.ne.s32.totalorder %s93, %s94
    %p103 = scmp.eq.s32.totalorder %s27, 0
    %p104 = por %p102, %p103
    %p105 = scmp.ne.s32.totalorder %s93, %s94
    %p106 = scmp.eq.s32.totalorder %s28, 1
    %p107 = por %p105, %p106
    %p109 = scmp.ne.s32.totalorder %s94, %s108
    %p110 = scmp.eq.s32.totalorder %s28, 0
    %p111 = por %p109, %p110
    %s113 = sadd.s32 %s112, 1
    %p116 = scmp.eq.s32.totalorder %s22, 1
    %p117 = scmp.ne.s32.totalorder %s112, %s114
    %p118 = scmp.eq.s32.totalorder %s22, 0
    %p119 = por %p117, %p118
    %p120 = scmp.ne.s32.totalorder %s112, %s114
    %p121 = scmp.eq.s32.totalorder %s27, 1
    %p122 = por %p120, %p121
    %p123 = scmp.ne.s32.totalorder %s114, %s115
    %p124 = scmp.eq.s32.totalorder %s27, 0
    %p125 = por %p123, %p124
    %p126 = scmp.ne.s32.totalorder %s114, %s115
    %p127 = scmp.eq.s32.totalorder %s28, 1
    %p128 = por %p126, %p127
    %p130 = scmp.ne.s32.totalorder %s115, %s129
    %p131 = scmp.eq.s32.totalorder %s28, 0
    %p132 = por %p130, %p131
    %s134 = sadd.s32 %s133, 1
    %p137 = scmp.eq.s32.totalorder %s22, 1
    %p138 = scmp.ne.s32.totalorder %s133, %s135
    %p139 = scmp.eq.s32.totalorder %s22, 0
    %p140 = por %p138, %p139
    %p141 = scmp.ne.s32.totalorder %s133, %s135
    %p142 = scmp.eq.s32.totalorder %s27, 1
    %p143 = por %p141, %p142
    %p144 = scmp.ne.s32.totalorder %s135, %s136
    %p145 = scmp.eq.s32.totalorder %s27, 0
    %p146 = por %p144, %p145
    %p147 = scmp.ne.s32.totalorder %s135, %s136
    %p148 = scmp.eq.s32.totalorder %s28, 1
    %p149 = por %p147, %p148
    %p151 = scmp.ne.s32.totalorder %s136, %s150
    %p152 = scmp.eq.s32.totalorder %s28, 0
    %p153 = por %p151, %p152
    %s155 = sadd.s32 %s154, 1
    %p158 = scmp.eq.s32.totalorder %s22, 1
    %p159 = scmp.ne.s32.totalorder %s154, %s156
    %p160 = scmp.eq.s32.totalorder %s22, 0
    %p161 = por %p159, %p160
    %p162 = scmp.ne.s32.totalorder %s154, %s156
    %p163 = scmp.eq.s32.totalorder %s27, 1
    %p164 = por %p162, %p163
    %p165 = scmp.ne.s32.totalorder %s156, %s157
    %p166 = scmp.eq.s32.totalorder %s27, 0
    %p167 = por %p165, %p166
    %p168 = scmp.ne.s32.totalorder %s156, %s157
    %p169 = scmp.eq.s32.totalorder %s28, 1
    %p170 = por %p168, %p169
    %p172 = scmp.ne.s32.totalorder %s157, %s171
    %p173 = scmp.eq.s32.totalorder %s28, 0
    %p174 = por %p172, %p173
    %s176 = sadd.s32 %s175, 1
    %p179 = scmp.eq.s32.totalorder %s22, 1
    %p180 = scmp.ne.s32.totalorder %s175, %s177
    %p181 = scmp.eq.s32.totalorder %s22, 0
    %p182 = por %p180, %p181
    %p183 = scmp.ne.s32.totalorder %s175, %s177
    %p184 = scmp.eq.s32.totalorder %s27, 1
    %p185 = por %p183, %p184
    %p186 = scmp.ne.s32.totalorder %s177, %s178
    %p187 = scmp.eq.s32.totalorder %s27, 0
    %p188 = por %p186, %p187
    %p189 = scmp.ne.s32.totalorder %s177, %s178
    %p190 = scmp.eq.s32.totalorder %s28, 1
    %p191 = por %p189, %p190
    %p193 = scmp.ne.s32.totalorder %s178, %s192
    %p194 = scmp.eq.s32.totalorder %s28, 0
    %p195 = por %p193, %p194
    %s197 = sadd.s32 %s196, 1
    %p200 = scmp.eq.s32.totalorder %s22, 1
    %p201 = scmp.ne.s32.totalorder %s196, %s198
    %p202 = scmp.eq.s32.totalorder %s22, 0
    %p203 = por %p201, %p202
    %p204 = scmp.ne.s32.totalorder %s196, %s198
    %p205 = scmp.eq.s32.totalorder %s27, 1
    %p206 = por %p204, %p205
    %p207 = scmp.ne.s32.totalorder %s198, %s199
    %p208 = scmp.eq.s32.totalorder %s27, 0
    %p209 = por %p207, %p208
    %p210 = scmp.ne.s32.totalorder %s198, %s199
    %p211 = scmp.eq.s32.totalorder %s28, 1
    %p212 = por %p210, %p211
    %p214 = scmp.ne.s32.totalorder %s199, %s213
    %p215 = scmp.eq.s32.totalorder %s28, 0
    %p216 = por %p214, %p215
    %s218 = sadd.s32 %s217, 1
    %p221 = scmp.eq.s32.totalorder %s22, 1
    %p222 = scmp.ne.s32.totalorder %s217, %s219
    %p223 = scmp.eq.s32.totalorder %s22, 0
    %p224 = por %p222, %p223
    %p225 = scmp.ne.s32.totalorder %s217, %s219
    %p226 = scmp.eq.s32.totalorder %s27, 1
    %p227 = por %p225, %p226
    %p228 = scmp.ne.s32.totalorder %s219, %s220
    %p229 = scmp.eq.s32.totalorder %s27, 0
    %p230 = por %p228, %p229
    %p231 = scmp.ne.s32.totalorder %s219, %s220
    %p232 = scmp.eq.s32.totalorder %s28, 1
    %p233 = por %p231, %p232
    %p235 = scmp.ne.s32.totalorder %s220, %s234
    %p236 = scmp.eq.s32.totalorder %s28, 0
    %p237 = por %p235, %p236
    %s239 = sadd.s32 %s238, 1
    %p242 = scmp.eq.s32.totalorder %s22, 1
    %p243 = scmp.ne.s32.totalorder %s238, %s240
    %p244 = scmp.eq.s32.totalorder %s22, 0
    %p245 = por %p243, %p244
    %p246 = scmp.ne.s32.totalorder %s238, %s240
    %p247 = scmp.eq.s32.totalorder %s27, 1
    %p248 = por %p246, %p247
    %p249 = scmp.ne.s32.totalorder %s240, %s241
    %p250 = scmp.eq.s32.totalorder %s27, 0
    %p251 = por %p249, %p250
    %p252 = scmp.ne.s32.totalorder %s240, %s241
    %p253 = scmp.eq.s32.totalorder %s28, 1
    %p254 = por %p252, %p253
    %p256 = scmp.ne.s32.totalorder %s241, %s255
    %p257 = scmp.eq.s32.totalorder %s28, 0
    %p258 = por %p256, %p257
    %s260 = sadd.s32 %s259, 1
    %p263 = scmp.eq.s32.totalorder %s22, 1
    %p264 = scmp.ne.s32.totalorder %s259, %s261
    %p265 = scmp.eq.s32.totalorder %s22, 0
    %p266 = por %p264, %p265
    %p267 = scmp.ne.s32.totalorder %s259, %s261
    %p268 = scmp.eq.s32.totalorder %s27, 1
    %p269 = por %p267, %p268
    %p270 = scmp.ne.s32.totalorder %s261, %s262
    %p271 = scmp.eq.s32.totalorder %s27, 0
    %p272 = por %p270, %p271
    %p273 = scmp.ne.s32.totalorder %s261, %s262
    %p274 = scmp.eq.s32.totalorder %s28, 1
    %p275 = por %p273, %p274
    %p277 = scmp.ne.s32.totalorder %s262, %s276
    %p278 = scmp.eq.s32.totalorder %s28, 0
    %p279 = por %p277, %p278
    %s281 = sadd.s32 %s280, 1
    %p284 = scmp.eq.s32.totalorder %s22, 1
    %p285 = scmp.ne.s32.totalorder %s280, %s282
    %p286 = scmp.eq.s32.totalorder %s22, 0
    %p287 = por %p285, %p286
    %p288 = scmp.ne.s32.totalorder %s280, %s282
    %p289 = scmp.eq.s32.totalorder %s27, 1
    %p290 = por %p288, %p289
    %p291 = scmp.ne.s32.totalorder %s282, %s283
    %p292 = scmp.eq.s32.totalorder %s27, 0
    %p293 = por %p291, %p292
    %p294 = scmp.ne.s32.totalorder %s282, %s283
    %p295 = scmp.eq.s32.totalorder %s28, 1
    %p296 = por %p294, %p295
    %p298 = scmp.ne.s32.totalorder %s283, %s297
    %p299 = scmp.eq.s32.totalorder %s28, 0
    %p300 = por %p298, %p299
    %s302 = sadd.s32 %s301, 1
    %p305 = scmp.eq.s32.totalorder %s22, 1
    %p306 = scmp.ne.s32.totalorder %s301, %s303
    %p307 = scmp.eq.s32.totalorder %s22, 0
    %p308 = por %p306, %p307
    %p309 = scmp.ne.s32.totalorder %s301, %s303
    %p310 = scmp.eq.s32.totalorder %s27, 1
    %p311 = por %p309, %p310
    %p312 = scmp.ne.s32.totalorder %s303, %s304
    %p313 = scmp.eq.s32.totalorder %s27, 0
    %p314 = por %p312, %p313
    %p315 = scmp.ne.s32.totalorder %s303, %s304
    %p316 = scmp.eq.s32.totalorder %s28, 1
    %p317 = por %p315, %p316
    %p319 = scmp.ne.s32.totalorder %s304, %s318
    %p320 = scmp.eq.s32.totalorder %s28, 0
    %p321 = por %p319, %p320
    %s322 = ssub.s32 %s29, %s41
    %s323 = ssub.s32 %s30, %s37
    %s324 = sor.u32 %s322, %s323
    %p325 = scmp.eq.s32.totalorder %s324, 0
    %s327 = sadd.s32 %s326, 1
    %s328 = scalar_select %p325, %s326, %s327
    %p331 = pneg %p325
    %p332 = scmp.eq.s32.totalorder %s22, 1
    %p333 = por %p331, %p332
    %p334 = scmp.ne.s32.totalorder %s326, %s329
    %p335 = scmp.eq.s32.totalorder %s22, 0
    %p336 = por %p334, %p335
    %p337 = scmp.ne.s32.totalorder %s326, %s329
    %p338 = scmp.eq.s32.totalorder %s27, 1
    %p339 = por %p337, %p338
    %p340 = scmp.ne.s32.totalorder %s329, %s330
    %p341 = scmp.eq.s32.totalorder %s27, 0
    %p342 = por %p340, %p341
    %p343 = scmp.ne.s32.totalorder %s329, %s330
    %p344 = scmp.eq.s32.totalorder %s28, 1
    %p345 = por %p343, %p344
    %p347 = scmp.ne.s32.totalorder %s330, %s346
    %p348 = scmp.eq.s32.totalorder %s28, 0
    %p349 = por %p347, %p348
    %s350 = ssub.s32 %s29, %s41
    %p351 = scmp.eq.s32.totalorder %s350, 0
    %s353 = sadd.s32 %s352, 1
    %s354 = scalar_select %p351, %s352, %s353
    %p357 = pneg %p351
    %p358 = scmp.eq.s32.totalorder %s22, 1
    %p359 = por %p357, %p358
    %p360 = scmp.ne.s32.totalorder %s352, %s355
    %p361 = scmp.eq.s32.totalorder %s22, 0
    %p362 = por %p360, %p361
    %p363 = scmp.ne.s32.totalorder %s352, %s355
    %p364 = scmp.eq.s32.totalorder %s27, 1
    %p365 = por %p363, %p364
    %p366 = scmp.ne.s32.totalorder %s355, %s356
    %p367 = scmp.eq.s32.totalorder %s27, 0
    %p368 = por %p366, %p367
    %p369 = scmp.ne.s32.totalorder %s355, %s356
    %p370 = scmp.eq.s32.totalorder %s28, 1
    %p371 = por %p369, %p370
    %p373 = scmp.ne.s32.totalorder %s356, %s372
    %p374 = scmp.eq.s32.totalorder %s28, 0
    %p375 = por %p373, %p374
    %s376 = ssub.s32 %s29, %s41
    %p377 = scmp.eq.s32.totalorder %s376, 0
    %s379 = sadd.s32 %s378, 1
    %s380 = scalar_select %p377, %s378, %s379
    %p383 = pneg %p377
    %p384 = scmp.eq.s32.totalorder %s22, 1
    %p385 = por %p383, %p384
    %p386 = scmp.ne.s32.totalorder %s378, %s381
    %p387 = scmp.eq.s32.totalorder %s22, 0
    %p388 = por %p386, %p387
    %p389 = scmp.ne.s32.totalorder %s378, %s381
    %p390 = scmp.eq.s32.totalorder %s27, 1
    %p391 = por %p389, %p390
    %p392 = scmp.ne.s32.totalorder %s381, %s382
    %p393 = scmp.eq.s32.totalorder %s27, 0
    %p394 = por %p392, %p393
    %p395 = scmp.ne.s32.totalorder %s381, %s382
    %p396 = scmp.eq.s32.totalorder %s28, 1
    %p397 = por %p395, %p396
    %p399 = scmp.ne.s32.totalorder %s382, %s398
    %p400 = scmp.eq.s32.totalorder %s28, 0
    %p401 = por %p399, %p400
    %p402 = scmp.le.s32.totalorder 1, %s22
    %p403 = scmp.lt.s32.totalorder %s22, 3
    %p404 = pnand %p402, %p403
    %p405 = pneg %p404
    // Predicated region
    $region9: #{tpu_custom_call.1} parent=5 // pred_check
      _
    $region10: #{tpu_custom_call.1} parent=5 // pred_check_branch
      %407 = sbr.rel (%p404) target = $region12
    $region11: #{tpu_custom_call.1} parent=5 // pred_region
      %s408 = ssub.s32 %s22, 1
      // Predicated region
      $region13: #{tpu_custom_call.1} parent=11 // pred_check
        %p409 = pneg %p83
      $region14: #{tpu_custom_call.1} parent=11 // pred_check_branch
        %411 = sbr.rel (%p409) target = $region16
      $region15: #{tpu_custom_call.1} parent=11 // pred_region
        _
      $region16: #{tpu_custom_call.1} parent=11 // pred_fallthru
        _
      // Predicated region
      $region17: #{tpu_custom_call.1} parent=11 // pred_check
        %p412 = pneg %p104
      $region18: #{tpu_custom_call.1} parent=11 // pred_check_branch
        %414 = sbr.rel (%p412) target = $region20
      $region19: #{tpu_custom_call.1} parent=11 // pred_region
        _
      $region20: #{tpu_custom_call.1} parent=11 // pred_fallthru
        _
      // Predicated region
      $region21: #{tpu_custom_call.1} parent=11 // pred_check
        %p415 = pneg %p125
      $region22: #{tpu_custom_call.1} parent=11 // pred_check_branch
        %417 = sbr.rel (%p415) target = $region24
      $region23: #{tpu_custom_call.1} parent=11 // pred_region
        _
      $region24: #{tpu_custom_call.1} parent=11 // pred_fallthru
        _
      // Predicated region
      $region25: #{tpu_custom_call.1} parent=11 // pred_check
        %p418 = pneg %p146
      $region26: #{tpu_custom_call.1} parent=11 // pred_check_branch
        %420 = sbr.rel (%p418) target = $region28
      $region27: #{tpu_custom_call.1} parent=11 // pred_region
        _
      $region28: #{tpu_custom_call.1} parent=11 // pred_fallthru
        _
      // Predicated region
      $region29: #{tpu_custom_call.1} parent=11 // pred_check
        %p421 = pneg %p167
      $region30: #{tpu_custom_call.1} parent=11 // pred_check_branch
        %423 = sbr.rel (%p421) target = $region32
      $region31: #{tpu_custom_call.1} parent=11 // pred_region
        _
      $region32: #{tpu_custom_call.1} parent=11 // pred_fallthru
        _
      // Predicated region
      $region33: #{tpu_custom_call.1} parent=11 // pred_check
        %p424 = pneg %p188
      $region34: #{tpu_custom_call.1} parent=11 // pred_check_branch
        %426 = sbr.rel (%p424) target = $region36
      $region35: #{tpu_custom_call.1} parent=11 // pred_region
        _
      $region36: #{tpu_custom_call.1} parent=11 // pred_fallthru
        _
      // Predicated region
      $region37: #{tpu_custom_call.1} parent=11 // pred_check
        %p427 = pneg %p209
      $region38: #{tpu_custom_call.1} parent=11 // pred_check_branch
        %429 = sbr.rel (%p427) target = $region40
      $region39: #{tpu_custom_call.1} parent=11 // pred_region
        _
      $region40: #{tpu_custom_call.1} parent=11 // pred_fallthru
        _
      // Predicated region
      $region41: #{tpu_custom_call.1} parent=11 // pred_check
        %p430 = pneg %p230
      $region42: #{tpu_custom_call.1} parent=11 // pred_check_branch
        %432 = sbr.rel (%p430) target = $region44
      $region43: #{tpu_custom_call.1} parent=11 // pred_region
        _
      $region44: #{tpu_custom_call.1} parent=11 // pred_fallthru
        _
      // Predicated region
      $region45: #{tpu_custom_call.1} parent=11 // pred_check
        %p433 = pneg %p251
      $region46: #{tpu_custom_call.1} parent=11 // pred_check_branch
        %435 = sbr.rel (%p433) target = $region48
      $region47: #{tpu_custom_call.1} parent=11 // pred_region
        _
      $region48: #{tpu_custom_call.1} parent=11 // pred_fallthru
        _
      // Predicated region
      $region49: #{tpu_custom_call.1} parent=11 // pred_check
        %p436 = pneg %p272
      $region50: #{tpu_custom_call.1} parent=11 // pred_check_branch
        %438 = sbr.rel (%p436) target = $region52
      $region51: #{tpu_custom_call.1} parent=11 // pred_region
        _
      $region52: #{tpu_custom_call.1} parent=11 // pred_fallthru
        _
      // Predicated region
      $region53: #{tpu_custom_call.1} parent=11 // pred_check
        %p439 = pneg %p293
      $region54: #{tpu_custom_call.1} parent=11 // pred_check_branch
        %441 = sbr.rel (%p439) target = $region56
      $region55: #{tpu_custom_call.1} parent=11 // pred_region
        _
      $region56: #{tpu_custom_call.1} parent=11 // pred_fallthru
        _
      // Predicated region
      $region57: #{tpu_custom_call.1} parent=11 // pred_check
        %p442 = pneg %p314
      $region58: #{tpu_custom_call.1} parent=11 // pred_check_branch
        %444 = sbr.rel (%p442) target = $region60
      $region59: #{tpu_custom_call.1} parent=11 // pred_region
        _
      $region60: #{tpu_custom_call.1} parent=11 // pred_fallthru
        _
    $region12: #{tpu_custom_call.1} parent=5 // pred_fallthru
      _
    %p445 = scmp.lt.s32.totalorder %s22, 2
    // Predicated region
    $region61: #{tpu_custom_call.1} parent=5 // pred_check
      %p446 = pneg %p445
    $region62: #{tpu_custom_call.1} parent=5 // pred_check_branch
      %448 = sbr.rel (%p446) target = $region64
    $region63: #{tpu_custom_call.1} parent=5 // pred_region
      // Predicated region
      $region65: #{tpu_custom_call.1} parent=63 // pred_check
        %p449 = pneg %p56
      $region66: #{tpu_custom_call.1} parent=63 // pred_check_branch
        %451 = sbr.rel (%p449) target = $region68
      $region67: #{tpu_custom_call.1} parent=63 // pred_region
        %p452 = scmp.lt.s32.totalorder %s29, 1
        %s453 = scalar_select %p452, %s29, 1
        %p454 = scmp.lt.s32.totalorder %s30, 0
        %s455 = scalar_select %p454, %s30, 0
        %s456 = sadd.s32 %s455, %s453
        %s457 = smul.addr %s456, 4
        %s458 = scalar_lea.vmem %s0, %s457
      $region68: #{tpu_custom_call.1} parent=63 // pred_fallthru
        _
    $region64: #{tpu_custom_call.1} parent=5 // pred_fallthru
      _
    %p459 = scmp.le.s32.totalorder 1, %s22
    %p460 = scmp.lt.s32.totalorder %s22, 3
    %p461 = pnand %p459, %p460
    %p462 = pneg %p461
    // Predicated region
    $region69: #{tpu_custom_call.1} parent=5 // pred_check
      _
    $region70: #{tpu_custom_call.1} parent=5 // pred_check_branch
      %464 = sbr.rel (%p461) target = $region72
    $region71: #{tpu_custom_call.1} parent=5 // pred_region
      %s465 = ssub.s32 %s22, 1
      %p466 = scmp.lt.s32.totalorder %s31, 1
      %s467 = scalar_select %p466, %s31, 1
      %p468 = scmp.lt.s32.totalorder %s32, 0
      %s469 = scalar_select %p468, %s32, 0
      %s470 = sadd.s32 %s469, %s467
      %s471 = smul.addr %s470, 4
      %s472 = scalar_lea.vmem %s0, %s471
      %p473 = pneg %p62
      %p474 = pneg %p59
      %p475 = pneg %p83
      %p476 = pneg %p80
      %p477 = pneg %p104
      %p478 = pneg %p101
      %p479 = pneg %p125
      %p480 = pneg %p122
      %p481 = pneg %p146
      %p482 = pneg %p143
      %p483 = pneg %p167
      %p484 = pneg %p164
      %p485 = pneg %p188
      %p486 = pneg %p185
      %p487 = pneg %p209
      %p488 = pneg %p206
      %p489 = pneg %p230
      %p490 = pneg %p227
      %p491 = pneg %p251
      %p492 = pneg %p248
      %p493 = pneg %p272
      %p494 = pneg %p269
      %p495 = pneg %p293
      %p496 = pneg %p290
      %p497 = pneg %p314
      %p498 = pneg %p311
      %p499 = pneg %p342
      %p500 = pneg %p339
      %p501 = scmp.lt.s32.totalorder %s31, 1
      %s502 = scalar_select %p501, %s31, 1
      %p503 = scmp.lt.s32.totalorder %s32, 0
      %s504 = scalar_select %p503, %s32, 0
      %s505 = sadd.s32 %s504, %s502
      %s506 = smul.addr %s505, 4
      %s507 = scalar_lea.vmem %s13, %s506
      %p508 = pneg %p368
      %p509 = pneg %p365
      %p510 = scmp.lt.s32.totalorder %s31, 1
      %s511 = scalar_select %p510, %s31, 1
      %s512 = smul.addr %s511, 8
      %s513 = scalar_lea.vmem %s14, %s512
      %p514 = pneg %p394
      %p515 = pneg %p391
      %p516 = scmp.lt.s32.totalorder %s31, 1
      %s517 = scalar_select %p516, %s31, 1
      %s518 = smul.addr %s517, 8
      %s519 = scalar_lea.vmem %s15, %s518
      %p520 = scmp.lt.s32.totalorder %s31, 1
      %s521 = scalar_select %p520, %s31, 1
      %p522 = scmp.lt.s32.totalorder %s32, 0
      %s523 = scalar_select %p522, %s32, 0
      %s524 = sadd.s32 %s523, %s521
      %s525 = smul.addr %s524, 4
      %s526 = scalar_lea.vmem %s0, %s525
      %p527 = scmp.lt.s32.totalorder %s31, 1
      %s528 = scalar_select %p527, %s31, 1
      %p529 = scmp.lt.s32.totalorder %s32, 0
      %s530 = scalar_select %p529, %s32, 0
      %s531 = sadd.s32 %s530, %s528
      %s532 = smul.addr %s531, 4
      %s533 = scalar_lea.vmem %s13, %s532
      %p534 = scmp.lt.s32.totalorder %s31, 1
      %s535 = scalar_select %p534, %s31, 1
      %s536 = smul.addr %s535, 8
      %s537 = scalar_lea.vmem %s14, %s536
      %p538 = scmp.lt.s32.totalorder %s31, 1
      %s539 = scalar_select %p538, %s31, 1
      %s540 = smul.addr %s539, 8
      %s541 = scalar_lea.vmem %s15, %s540
      %v542 = vld [vmem:[%s526] sm:$0x7]
      %s543 = scalar_lea.vmem %s1, %s31
      %v544 = vld [vmem:[%s543] sm:$0x1]
      %v545 = vmul.f32 %v544, %v544
      %547 = vrot.lane.b32.xlu0 %v545, 127
      %v548 = vpop.permute.xlu0 %547
      %v550 = vadd.f32 %v545, %v548
      %551 = vrot.lane.b32.xlu0 %v545, 126
      %v552 = vpop.permute.xlu0 %551
      %v554 = vadd.f32 %v550, %v552
      %555 = vrot.lane.b32.xlu0 %v545, 125
      %v556 = vpop.permute.xlu0 %555
      %v558 = vadd.f32 %v554, %v556
      %v559 = vadd.f32 %v558, 1e-12
      %v560 = vrsqrt.pop %v559
      %v561 = vmul.f32 %v560, %v559
      %v562 = vmul.f32 %v561, %v560
      %v563 = vmul.f32 0.5, %v562
      %v564 = vsub.f32 1.5, %v563
      %v565 = vmul.f32 %v560, %v564
      %vm566 = vweird.f32 %v559
      %vm567 = vweird.f32 %v560
      %vm568 = vmor %vm566, %vm567
      %v569 = vsel %vm568, %v560, %v565
      %v570 = vmul.f32 %v544, %v569
      %572 = vrot.lane.b32.xlu0 %v569, 1
      %v573 = vpop.permute.xlu0 %572
      %v575 = vmul.f32 %v544, %v573
      %576 = vrot.lane.b32.xlu0 %v569, 2
      %v577 = vpop.permute.xlu0 %576
      %v579 = vmul.f32 %v544, %v577
      %580 = vrot.lane.b32.xlu0 %v569, 3
      %v581 = vpop.permute.xlu0 %580
      %v583 = vmul.f32 %v544, %v581
      %v584 = vmul.f32 %v579, %v579
      %v585 = vmul.f32 %v583, %v583
      %587 = vrot.lane.b32.xlu0 %v585, 127
      %v588 = vpop.permute.xlu0 %587
      %v590 = vadd.f32 %v584, %v588
      %v591 = vmul.f32 %v590, 2.0
      %v592 = vsub.f32 1.0, %v591
      %594 = vrot.lane.b32.xlu0 %v579, 127
      %v595 = vpop.permute.xlu0 %594
      %v597 = vmul.f32 %v575, %v595
      %599 = vrot.lane.b32.xlu0 %v583, 125
      %v600 = vpop.permute.xlu0 %599
      %v602 = vmul.f32 %v570, %v600
      %604 = vrot.lane.b32.xlu0 %v602, 1
      %v605 = vpop.permute.xlu0 %604
      %v607 = vsub.f32 %v597, %v605
      %v608 = vmul.f32 %v607, 2.0
      %609 = vrot.lane.b32.xlu0 %v583, 126
      %v610 = vpop.permute.xlu0 %609
      %v612 = vmul.f32 %v575, %v610
      %613 = vrot.lane.b32.xlu0 %v579, 126
      %v614 = vpop.permute.xlu0 %613
      %v616 = vmul.f32 %v570, %v614
      %618 = vrot.lane.b32.xlu0 %v616, 1
      %v619 = vpop.permute.xlu0 %618
      %v621 = vadd.f32 %v612, %v619
      %v622 = vmul.f32 %v621, 2.0
      %v623 = vadd.f32 %v597, %v605
      %v624 = vmul.f32 %v623, 2.0
      %v625 = vmul.f32 %v575, %v575
      %626 = vrot.lane.b32.xlu0 %v585, 126
      %v627 = vpop.permute.xlu0 %626
      %v629 = vadd.f32 %v625, %v627
      %v630 = vmul.f32 %v629, 2.0
      %v631 = vsub.f32 1.0, %v630
      %632 = vrot.lane.b32.xlu0 %v583, 127
      %v633 = vpop.permute.xlu0 %632
      %v635 = vmul.f32 %v579, %v633
      %637 = vrot.lane.b32.xlu0 %v575, 127
      %v638 = vpop.permute.xlu0 %637
      %v640 = vmul.f32 %v570, %v638
      %642 = vrot.lane.b32.xlu0 %v640, 2
      %v643 = vpop.permute.xlu0 %642
      %v645 = vsub.f32 %v635, %v643
      %v646 = vmul.f32 %v645, 2.0
      %v647 = vsub.f32 %v612, %v619
      %v648 = vmul.f32 %v647, 2.0
      %v649 = vadd.f32 %v635, %v643
      %v650 = vmul.f32 %v649, 2.0
      %652 = vrot.lane.b32.xlu0 %v584, 127
      %v653 = vpop.permute.xlu0 %652
      %v655 = vadd.f32 %v625, %v653
      %v656 = vmul.f32 %v655, 2.0
      %v657 = vsub.f32 1.0, %v656
      %659 = vset.pattern.permute.xlu0 5
      %660 = vperm.xlu0 %659, %v592
      %v661 = vpop.permute.xlu0 %660
      %v663 = vmul.f32 %v661, %v542
      %665 = vset.pattern.permute.xlu0 4
      %666 = vperm.xlu0 %665, %v608
      %v667 = vpop.permute.xlu0 %666
      %v670 = vrot.slane %v542, 1
      %v672 = vmul.f32 %v667, %v670
      %v673 = vadd.f32 %v663, %v672
      %675 = vset.pattern.permute.xlu0 4
      %676 = vperm.xlu0 %675, %v622
      %v677 = vpop.permute.xlu0 %676
      %v679 = vrot.slane %v542, 2
      %v681 = vmul.f32 %v677, %v679
      %v682 = vadd.f32 %v673, %v681
      %684 = vset.pattern.permute.xlu0 0
      %685 = vperm.xlu0 %684, %v544
      %v686 = vpop.permute.xlu0 %685
      %v688 = vadd.f32 %v682, %v686
      %690 = vset.pattern.permute.xlu0 4
      %691 = vperm.xlu0 %690, %v624
      %v692 = vpop.permute.xlu0 %691
      %v694 = vmul.f32 %v692, %v542
      %696 = vset.pattern.permute.xlu0 4
      %697 = vperm.xlu0 %696, %v631
      %v698 = vpop.permute.xlu0 %697
      %v700 = vmul.f32 %v698, %v670
      %v701 = vadd.f32 %v694, %v700
      %703 = vset.pattern.permute.xlu0 5
      %704 = vperm.xlu0 %703, %v646
      %v705 = vpop.permute.xlu0 %704
      %v707 = vmul.f32 %v705, %v679
      %v708 = vadd.f32 %v701, %v707
      %709 = vset.pattern.permute.xlu0 1
      %710 = vperm.xlu0 %709, %v544
      %v711 = vpop.permute.xlu0 %710
      %v713 = vadd.f32 %v708, %v711
      %715 = vset.pattern.permute.xlu0 4
      %716 = vperm.xlu0 %715, %v648
      %v717 = vpop.permute.xlu0 %716
      %v719 = vmul.f32 %v717, %v542
      %721 = vset.pattern.permute.xlu0 5
      %722 = vperm.xlu0 %721, %v650
      %v723 = vpop.permute.xlu0 %722
      %v725 = vmul.f32 %v723, %v670
      %v726 = vadd.f32 %v719, %v725
      %728 = vset.pattern.permute.xlu0 4
      %729 = vperm.xlu0 %728, %v657
      %v730 = vpop.permute.xlu0 %729
      %v732 = vmul.f32 %v730, %v679
      %v733 = vadd.f32 %v726, %v732
      %734 = vset.pattern.permute.xlu0 2
      %735 = vperm.xlu0 %734, %v544
      %v736 = vpop.permute.xlu0 %735
      %v738 = vadd.f32 %v733, %v736
      %v740 = vrot.slane %v713, 7
      %v743 = vrot.slane %v738, 6
      %vm745 = vcmask 1040384
      %v746 = vsel %vm745, %v688, %v740
      %vm747 = vcmask 1041408
      %v748 = vsel %vm747, %v746, %v743
      %749 = vst [vmem:[%s533] sm:$0x7] %v748
      %v750 = vld [vmem:[%s3] sm:$0xff]
      %v751 = vld [vmem:[%s3 + $0x8] sm:$0xff]
      %v752 = vld [vmem:[%s3 + $0x10] sm:$0xff]
      %v753 = vld [vmem:[%s3 + $0x18] sm:$0xff]
      %v754 = vld [vmem:[%s3 + $0x20] sm:$0xff]
      %v755 = vld [vmem:[%s3 + $0x28] sm:$0xff]
      %v756 = vld [vmem:[%s3 + $0x30] sm:$0xff]
      %v757 = vld [vmem:[%s3 + $0x38] sm:$0xff]
      %759 = vset.pattern.permute.xlu0 0
      %760 = vperm.xlu0 %759, %v750
      %v761 = vpop.permute.xlu0 %760
      %764 = vset.pattern.permute.xlu0 0
      %765 = vperm.xlu0 %764, %v751
      %v766 = vpop.permute.xlu0 %765
      %769 = vset.pattern.permute.xlu0 0
      %770 = vperm.xlu0 %769, %v752
      %v771 = vpop.permute.xlu0 %770
      %774 = vset.pattern.permute.xlu0 0
      %775 = vperm.xlu0 %774, %v753
      %v776 = vpop.permute.xlu0 %775
      %779 = vset.pattern.permute.xlu0 0
      %780 = vperm.xlu0 %779, %v754
      %v781 = vpop.permute.xlu0 %780
      %784 = vset.pattern.permute.xlu0 0
      %785 = vperm.xlu0 %784, %v755
      %v786 = vpop.permute.xlu0 %785
      %789 = vset.pattern.permute.xlu0 0
      %790 = vperm.xlu0 %789, %v756
      %v791 = vpop.permute.xlu0 %790
      %794 = vset.pattern.permute.xlu0 0
      %795 = vperm.xlu0 %794, %v757
      %v796 = vpop.permute.xlu0 %795
      %v798 = vperm.slane %v542, 0
      %v799 = vmul.f32 %v761, %v798
      %v800 = vmul.f32 %v766, %v798
      %v801 = vmul.f32 %v771, %v798
      %v802 = vmul.f32 %v776, %v798
      %v803 = vmul.f32 %v781, %v798
      %v804 = vmul.f32 %v786, %v798
      %v805 = vmul.f32 %v791, %v798
      %v806 = vmul.f32 %v796, %v798
      %807 = vset.pattern.permute.xlu0 1
      %808 = vperm.xlu0 %807, %v750
      %v809 = vpop.permute.xlu0 %808
      %811 = vset.pattern.permute.xlu0 1
      %812 = vperm.xlu0 %811, %v751
      %v813 = vpop.permute.xlu0 %812
      %815 = vset.pattern.permute.xlu0 1
      %816 = vperm.xlu0 %815, %v752
      %v817 = vpop.permute.xlu0 %816
      %819 = vset.pattern.permute.xlu0 1
      %820 = vperm.xlu0 %819, %v753
      %v821 = vpop.permute.xlu0 %820
      %823 = vset.pattern.permute.xlu0 1
      %824 = vperm.xlu0 %823, %v754
      %v825 = vpop.permute.xlu0 %824
      %827 = vset.pattern.permute.xlu0 1
      %828 = vperm.xlu0 %827, %v755
      %v829 = vpop.permute.xlu0 %828
      %831 = vset.pattern.permute.xlu0 1
      %832 = vperm.xlu0 %831, %v756
      %v833 = vpop.permute.xlu0 %832
      %835 = vset.pattern.permute.xlu0 1
      %836 = vperm.xlu0 %835, %v757
      %v837 = vpop.permute.xlu0 %836
      %v839 = vperm.slane %v542, 1
      %v840 = vmul.f32 %v809, %v839
      %v841 = vmul.f32 %v813, %v839
      %v842 = vmul.f32 %v817, %v839
      %v843 = vmul.f32 %v821, %v839
      %v844 = vmul.f32 %v825, %v839
      %v845 = vmul.f32 %v829, %v839
      %v846 = vmul.f32 %v833, %v839
      %v847 = vmul.f32 %v837, %v839
      %v848 = vadd.f32 %v799, %v840
      %v849 = vadd.f32 %v800, %v841
      %v850 = vadd.f32 %v801, %v842
      %v851 = vadd.f32 %v802, %v843
      %v852 = vadd.f32 %v803, %v844
      %v853 = vadd.f32 %v804, %v845
      %v854 = vadd.f32 %v805, %v846
      %v855 = vadd.f32 %v806, %v847
      %856 = vset.pattern.permute.xlu0 2
      %857 = vperm.xlu0 %856, %v750
      %v858 = vpop.permute.xlu0 %857
      %860 = vset.pattern.permute.xlu0 2
      %861 = vperm.xlu0 %860, %v751
      %v862 = vpop.permute.xlu0 %861
      %864 = vset.pattern.permute.xlu0 2
      %865 = vperm.xlu0 %864, %v752
      %v866 = vpop.permute.xlu0 %865
      %868 = vset.pattern.permute.xlu0 2
      %869 = vperm.xlu0 %868, %v753
      %v870 = vpop.permute.xlu0 %869
      %872 = vset.pattern.permute.xlu0 2
      %873 = vperm.xlu0 %872, %v754
      %v874 = vpop.permute.xlu0 %873
      %876 = vset.pattern.permute.xlu0 2
      %877 = vperm.xlu0 %876, %v755
      %v878 = vpop.permute.xlu0 %877
      %880 = vset.pattern.permute.xlu0 2
      %881 = vperm.xlu0 %880, %v756
      %v882 = vpop.permute.xlu0 %881
      %884 = vset.pattern.permute.xlu0 2
      %885 = vperm.xlu0 %884, %v757
      %v886 = vpop.permute.xlu0 %885
      %v888 = vperm.slane %v542, 2
      %v889 = vmul.f32 %v858, %v888
      %v890 = vmul.f32 %v862, %v888
      %v891 = vmul.f32 %v866, %v888
      %v892 = vmul.f32 %v870, %v888
      %v893 = vmul.f32 %v874, %v888
      %v894 = vmul.f32 %v878, %v888
      %v895 = vmul.f32 %v882, %v888
      %v896 = vmul.f32 %v886, %v888
      %v897 = vadd.f32 %v848, %v889
      %v898 = vadd.f32 %v849, %v890
      %v899 = vadd.f32 %v850, %v891
      %v900 = vadd.f32 %v851, %v892
      %v901 = vadd.f32 %v852, %v893
      %v902 = vadd.f32 %v853, %v894
      %v903 = vadd.f32 %v854, %v895
      %v904 = vadd.f32 %v855, %v896
      %v905 = vld [vmem:[%s4] sm:$0xff]
      %v906 = vld [vmem:[%s4 + $0x8] sm:$0xff]
      %v907 = vld [vmem:[%s4 + $0x10] sm:$0xff]
      %v908 = vld [vmem:[%s4 + $0x18] sm:$0xff]
      %v909 = vld [vmem:[%s4 + $0x20] sm:$0xff]
      %v910 = vld [vmem:[%s4 + $0x28] sm:$0xff]
      %v911 = vld [vmem:[%s4 + $0x30] sm:$0xff]
      %v912 = vld [vmem:[%s4 + $0x38] sm:$0xff]
      %914 = vset.pattern.permute.xlu0 0
      %915 = vperm.xlu0 %914, %v905
      %v916 = vpop.permute.xlu0 %915
      %919 = vset.pattern.permute.xlu0 0
      %920 = vperm.xlu0 %919, %v906
      %v921 = vpop.permute.xlu0 %920
      %924 = vset.pattern.permute.xlu0 0
      %925 = vperm.xlu0 %924, %v907
      %v926 = vpop.permute.xlu0 %925
      %929 = vset.pattern.permute.xlu0 0
      %930 = vperm.xlu0 %929, %v908
      %v931 = vpop.permute.xlu0 %930
      %934 = vset.pattern.permute.xlu0 0
      %935 = vperm.xlu0 %934, %v909
      %v936 = vpop.permute.xlu0 %935
      %939 = vset.pattern.permute.xlu0 0
      %940 = vperm.xlu0 %939, %v910
      %v941 = vpop.permute.xlu0 %940
      %944 = vset.pattern.permute.xlu0 0
      %945 = vperm.xlu0 %944, %v911
      %v946 = vpop.permute.xlu0 %945
      %949 = vset.pattern.permute.xlu0 0
      %950 = vperm.xlu0 %949, %v912
      %v951 = vpop.permute.xlu0 %950
      %v953 = vadd.f32 %v897, %v916
      %v954 = vadd.f32 %v898, %v921
      %v955 = vadd.f32 %v899, %v926
      %v956 = vadd.f32 %v900, %v931
      %v957 = vadd.f32 %v901, %v936
      %v958 = vadd.f32 %v902, %v941
      %v959 = vadd.f32 %v903, %v946
      %v960 = vadd.f32 %v904, %v951
      %v961 = vmax.f32 %v953, 0.0
      %v962 = vmax.f32 %v954, 0.0
      %v963 = vmax.f32 %v955, 0.0
      %v964 = vmax.f32 %v956, 0.0
      %v965 = vmax.f32 %v957, 0.0
      %v966 = vmax.f32 %v958, 0.0
      %v967 = vmax.f32 %v959, 0.0
      %v968 = vmax.f32 %v960, 0.0
      %v969 = vld [vmem:[%s5] sm:$0xff]
      %v970 = vld [vmem:[%s5 + $0x8] sm:$0xff]
      %v971 = vld [vmem:[%s5 + $0x10] sm:$0xff]
      %v972 = vld [vmem:[%s5 + $0x18] sm:$0xff]
      %v973 = vld [vmem:[%s5 + $0x20] sm:$0xff]
      %v974 = vld [vmem:[%s5 + $0x28] sm:$0xff]
      %v975 = vld [vmem:[%s5 + $0x30] sm:$0xff]
      %v976 = vld [vmem:[%s5 + $0x38] sm:$0xff]
      %v977 = vld [vmem:[%s5 + $0x40] sm:$0xff]
      %v978 = vld [vmem:[%s5 + $0x48] sm:$0xff]
      %v979 = vld [vmem:[%s5 + $0x50] sm:$0xff]
      %v980 = vld [vmem:[%s5 + $0x58] sm:$0xff]
      %v981 = vld [vmem:[%s5 + $0x60] sm:$0xff]
      %v982 = vld [vmem:[%s5 + $0x68] sm:$0xff]
      %v983 = vld [vmem:[%s5 + $0x70] sm:$0xff]
      %v984 = vld [vmem:[%s5 + $0x78] sm:$0xff]
      %v985 = vld [vmem:[%s6] sm:$0xff]
      %v986 = vld [vmem:[%s6 + $0x8] sm:$0xff]
      %v987 = vld [vmem:[%s6 + $0x10] sm:$0xff]
      %v988 = vld [vmem:[%s6 + $0x18] sm:$0xff]
      %v989 = vld [vmem:[%s6 + $0x20] sm:$0xff]
      %v990 = vld [vmem:[%s6 + $0x28] sm:$0xff]
      %v991 = vld [vmem:[%s6 + $0x30] sm:$0xff]
      %v992 = vld [vmem:[%s6 + $0x38] sm:$0xff]
      %v993 = vld [vmem:[%s6 + $0x40] sm:$0xff]
      %v994 = vld [vmem:[%s6 + $0x48] sm:$0xff]
      %v995 = vld [vmem:[%s6 + $0x50] sm:$0xff]
      %v996 = vld [vmem:[%s6 + $0x58] sm:$0xff]
      %v997 = vld [vmem:[%s6 + $0x60] sm:$0xff]
      %v998 = vld [vmem:[%s6 + $0x68] sm:$0xff]
      %v999 = vld [vmem:[%s6 + $0x70] sm:$0xff]
      %v1000 = vld [vmem:[%s6 + $0x78] sm:$0xff]
      %1002 = vset.pattern.permute.xlu0 0
      %1003 = vperm.xlu0 %1002, %v985
      %v1004 = vpop.permute.xlu0 %1003
      %1007 = vset.pattern.permute.xlu0 0
      %1008 = vperm.xlu0 %1007, %v986
      %v1009 = vpop.permute.xlu0 %1008
      %1012 = vset.pattern.permute.xlu0 0
      %1013 = vperm.xlu0 %1012, %v987
      %v1014 = vpop.permute.xlu0 %1013
      %1017 = vset.pattern.permute.xlu0 0
      %1018 = vperm.xlu0 %1017, %v988
      %v1019 = vpop.permute.xlu0 %1018
      %1022 = vset.pattern.permute.xlu0 0
      %1023 = vperm.xlu0 %1022, %v989
      %v1024 = vpop.permute.xlu0 %1023
      %1027 = vset.pattern.permute.xlu0 0
      %1028 = vperm.xlu0 %1027, %v990
      %v1029 = vpop.permute.xlu0 %1028
      %1032 = vset.pattern.permute.xlu0 0
      %1033 = vperm.xlu0 %1032, %v991
      %v1034 = vpop.permute.xlu0 %1033
      %1037 = vset.pattern.permute.xlu0 0
      %1038 = vperm.xlu0 %1037, %v992
      %v1039 = vpop.permute.xlu0 %1038
      %1042 = vset.pattern.permute.xlu0 0
      %1043 = vperm.xlu0 %1042, %v993
      %v1044 = vpop.permute.xlu0 %1043
      %1047 = vset.pattern.permute.xlu0 0
      %1048 = vperm.xlu0 %1047, %v994
      %v1049 = vpop.permute.xlu0 %1048
      %1052 = vset.pattern.permute.xlu0 0
      %1053 = vperm.xlu0 %1052, %v995
      %v1054 = vpop.permute.xlu0 %1053
      %1057 = vset.pattern.permute.xlu0 0
      %1058 = vperm.xlu0 %1057, %v996
      %v1059 = vpop.permute.xlu0 %1058
      %1062 = vset.pattern.permute.xlu0 0
      %1063 = vperm.xlu0 %1062, %v997
      %v1064 = vpop.permute.xlu0 %1063
      %1067 = vset.pattern.permute.xlu0 0
      %1068 = vperm.xlu0 %1067, %v998
      %v1069 = vpop.permute.xlu0 %1068
      %1072 = vset.pattern.permute.xlu0 0
      %1073 = vperm.xlu0 %1072, %v999
      %v1074 = vpop.permute.xlu0 %1073
      %1077 = vset.pattern.permute.xlu0 0
      %1078 = vperm.xlu0 %1077, %v1000
      %v1079 = vpop.permute.xlu0 %1078
      %vm1081 = vcmask 523264
      %v1083 = vsel %vm1081, %v969, 0
      %v1086 = vsel %vm1081, %v970, 0
      %v1089 = vsel %vm1081, %v971, 0
      %v1092 = vsel %vm1081, %v972, 0
      %v1095 = vsel %vm1081, %v973, 0
      %v1098 = vsel %vm1081, %v974, 0
      %v1101 = vsel %vm1081, %v975, 0
      %v1104 = vsel %vm1081, %v976, 0
      %v1107 = vsel %vm1081, %v977, 0
      %v1110 = vsel %vm1081, %v978, 0
      %v1113 = vsel %vm1081, %v979, 0
      %v1116 = vsel %vm1081, %v980, 0
      %v1119 = vsel %vm1081, %v981, 0
      %v1122 = vsel %vm1081, %v982, 0
      %v1125 = vsel %vm1081, %v983, 0
      %v1128 = vsel %vm1081, %v984, 0
      %1130 = vmatpush.msra.mxu0 0.0
      %1131 = vmatpush.msra.mxu0 0.0
      %1132 = vmatpush.msra.mxu0 0.0
      %1133 = vmatpush.msra.mxu0 0.0
      %1134 = vmatpush.msra.mxu0 0.0
      %1135 = vmatpush.msra.mxu0 0.0
      %1136 = vmatpush.msra.mxu0 0.0
      %1137 = vmatpush.msra.mxu0 0.0
      %1138 = vmatpush.msra.mxu0 %v968
      %1139 = vmatpush.msra.mxu0 %v967
      %1140 = vmatpush.msra.mxu0 %v966
      %1141 = vmatpush.msra.mxu0 %v965
      %1142 = vmatpush.msra.mxu0 %v964
      %1143 = vmatpush.msra.mxu0 %v963
      %1144 = vmatpush.msra.mxu0 %v962
      %1145 = vmatpush.msra.mxu0 %v961
      %1146 = vmatmul.f32.gmra.mxu0 %v1083
      %v1147 = vpop.f32.mrf.mxu0
      %v1148 = vadd.f32 %v1004, %v1147
      %1149 = vmatmul.f32.gmra.mxu0 %v1086
      %v1150 = vpop.f32.mrf.mxu0
      %v1151 = vadd.f32 %v1009, %v1150
      %1152 = vmatmul.f32.gmra.mxu0 %v1089
      %v1153 = vpop.f32.mrf.mxu0
      %v1154 = vadd.f32 %v1014, %v1153
      %1155 = vmatmul.f32.gmra.mxu0 %v1092
      %v1156 = vpop.f32.mrf.mxu0
      %v1157 = vadd.f32 %v1019, %v1156
      %1158 = vmatmul.f32.gmra.mxu0 %v1095
      %v1159 = vpop.f32.mrf.mxu0
      %v1160 = vadd.f32 %v1024, %v1159
      %1161 = vmatmul.f32.gmra.mxu0 %v1098
      %v1162 = vpop.f32.mrf.mxu0
      %v1163 = vadd.f32 %v1029, %v1162
      %1164 = vmatmul.f32.gmra.mxu0 %v1101
      %v1165 = vpop.f32.mrf.mxu0
      %v1166 = vadd.f32 %v1034, %v1165
      %1167 = vmatmul.f32.gmra.mxu0 %v1104
      %v1168 = vpop.f32.mrf.mxu0
      %v1169 = vadd.f32 %v1039, %v1168
      %1170 = vmatmul.f32.gmra.mxu0 %v1107
      %v1171 = vpop.f32.mrf.mxu0
      %v1172 = vadd.f32 %v1044, %v1171
      %1173 = vmatmul.f32.gmra.mxu0 %v1110
      %v1174 = vpop.f32.mrf.mxu0
      %v1175 = vadd.f32 %v1049, %v1174
      %1176 = vmatmul.f32.gmra.mxu0 %v1113
      %v1177 = vpop.f32.mrf.mxu0
      %v1178 = vadd.f32 %v1054, %v1177
      %1179 = vmatmul.f32.gmra.mxu0 %v1116
      %v1180 = vpop.f32.mrf.mxu0
      %v1181 = vadd.f32 %v1059, %v1180
      %1182 = vmatmul.f32.gmra.mxu0 %v1119
      %v1183 = vpop.f32.mrf.mxu0
      %v1184 = vadd.f32 %v1064, %v1183
      %1185 = vmatmul.f32.gmra.mxu0 %v1122
      %v1186 = vpop.f32.mrf.mxu0
      %v1187 = vadd.f32 %v1069, %v1186
      %1188 = vmatmul.f32.gmra.mxu0 %v1125
      %v1189 = vpop.f32.mrf.mxu0
      %v1190 = vadd.f32 %v1074, %v1189
      %1191 = vmatmul.f32.gmra.mxu0 %v1128
      %v1192 = vpop.f32.mrf.mxu0
      %v1193 = vadd.f32 %v1079, %v1192
      %1194 = vdwg.mxu0
      %v1195 = vmax.f32 %v1148, 0.0
      %v1196 = vmax.f32 %v1151, 0.0
      %v1197 = vmax.f32 %v1154, 0.0
      %v1198 = vmax.f32 %v1157, 0.0
      %v1199 = vmax.f32 %v1160, 0.0
      %v1200 = vmax.f32 %v1163, 0.0
      %v1201 = vmax.f32 %v1166, 0.0
      %v1202 = vmax.f32 %v1169, 0.0
      %v1203 = vmax.f32 %v1172, 0.0
      %v1204 = vmax.f32 %v1175, 0.0
      %v1205 = vmax.f32 %v1178, 0.0
      %v1206 = vmax.f32 %v1181, 0.0
      %v1207 = vmax.f32 %v1184, 0.0
      %v1208 = vmax.f32 %v1187, 0.0
      %v1209 = vmax.f32 %v1190, 0.0
      %v1210 = vmax.f32 %v1193, 0.0
      %v1211 = vld [vmem:[%s7] sm:$0xf]
      %v1212 = vld [vmem:[%s7 + $0x4] sm:$0xf]
      %v1213 = vld [vmem:[%s7 + $0x8] sm:$0xf]
      %v1214 = vld [vmem:[%s7 + $0xc] sm:$0xf]
      %v1215 = vld [vmem:[%s7 + $0x10] sm:$0xf]
      %v1216 = vld [vmem:[%s7 + $0x14] sm:$0xf]
      %v1217 = vld [vmem:[%s7 + $0x18] sm:$0xf]
      %v1218 = vld [vmem:[%s7 + $0x1c] sm:$0xf]
      %v1219 = vld [vmem:[%s7 + $0x20] sm:$0xf]
      %v1220 = vld [vmem:[%s7 + $0x24] sm:$0xf]
      %v1221 = vld [vmem:[%s7 + $0x28] sm:$0xf]
      %v1222 = vld [vmem:[%s7 + $0x2c] sm:$0xf]
      %v1223 = vld [vmem:[%s7 + $0x30] sm:$0xf]
      %v1224 = vld [vmem:[%s7 + $0x34] sm:$0xf]
      %v1225 = vld [vmem:[%s7 + $0x38] sm:$0xf]
      %v1226 = vld [vmem:[%s7 + $0x3c] sm:$0xf]
      %v1227 = vld [vmem:[%s7 + $0x40] sm:$0xf]
      %v1228 = vld [vmem:[%s7 + $0x44] sm:$0xf]
      %v1229 = vld [vmem:[%s7 + $0x48] sm:$0xf]
      %v1230 = vld [vmem:[%s7 + $0x4c] sm:$0xf]
      %v1231 = vld [vmem:[%s7 + $0x50] sm:$0xf]
      %v1232 = vld [vmem:[%s7 + $0x54] sm:$0xf]
      %v1233 = vld [vmem:[%s7 + $0x58] sm:$0xf]
      %v1234 = vld [vmem:[%s7 + $0x5c] sm:$0xf]
      %v1235 = vld [vmem:[%s7 + $0x60] sm:$0xf]
      %v1236 = vld [vmem:[%s7 + $0x64] sm:$0xf]
      %v1237 = vld [vmem:[%s7 + $0x68] sm:$0xf]
      %v1238 = vld [vmem:[%s7 + $0x6c] sm:$0xf]
      %v1239 = vld [vmem:[%s7 + $0x70] sm:$0xf]
      %v1240 = vld [vmem:[%s7 + $0x74] sm:$0xf]
      %v1241 = vld [vmem:[%s7 + $0x78] sm:$0xf]
      %v1242 = vld [vmem:[%s7 + $0x7c] sm:$0xf]
      %v1243 = vpack.c.bf16 %v1196, %v1195
      %v1244 = vpack.c.bf16 %v1198, %v1197
      %v1245 = vpack.c.bf16 %v1200, %v1199
      %v1246 = vpack.c.bf16 %v1202, %v1201
      %v1247 = vpack.c.bf16 %v1204, %v1203
      %v1248 = vpack.c.bf16 %v1206, %v1205
      %v1249 = vpack.c.bf16 %v1208, %v1207
      %v1250 = vpack.c.bf16 %v1210, %v1209
      %v1251 = vld [vmem:[%s8] sm:$0xff]
      %v1252 = vld [vmem:[%s8 + $0x8] sm:$0xff]
      %v1253 = vld [vmem:[%s8 + $0x10] sm:$0xff]
      %v1254 = vld [vmem:[%s8 + $0x18] sm:$0xff]
      %v1255 = vld [vmem:[%s8 + $0x20] sm:$0xff]
      %v1256 = vld [vmem:[%s8 + $0x28] sm:$0xff]
      %v1257 = vld [vmem:[%s8 + $0x30] sm:$0xff]
      %v1258 = vld [vmem:[%s8 + $0x38] sm:$0xff]
      %v1259 = vld [vmem:[%s8 + $0x40] sm:$0xff]
      %v1260 = vld [vmem:[%s8 + $0x48] sm:$0xff]
      %v1261 = vld [vmem:[%s8 + $0x50] sm:$0xff]
      %v1262 = vld [vmem:[%s8 + $0x58] sm:$0xff]
      %v1263 = vld [vmem:[%s8 + $0x60] sm:$0xff]
      %v1264 = vld [vmem:[%s8 + $0x68] sm:$0xff]
      %v1265 = vld [vmem:[%s8 + $0x70] sm:$0xff]
      %v1266 = vld [vmem:[%s8 + $0x78] sm:$0xff]
      %v1267 = vld [vmem:[%s8 + $0x80] sm:$0xff]
      %v1268 = vld [vmem:[%s8 + $0x88] sm:$0xff]
      %v1269 = vld [vmem:[%s8 + $0x90] sm:$0xff]
      %v1270 = vld [vmem:[%s8 + $0x98] sm:$0xff]
      %v1271 = vld [vmem:[%s8 + $0xa0] sm:$0xff]
      %v1272 = vld [vmem:[%s8 + $0xa8] sm:$0xff]
      %v1273 = vld [vmem:[%s8 + $0xb0] sm:$0xff]
      %v1274 = vld [vmem:[%s8 + $0xb8] sm:$0xff]
      %v1275 = vld [vmem:[%s8 + $0xc0] sm:$0xff]
      %v1276 = vld [vmem:[%s8 + $0xc8] sm:$0xff]
      %v1277 = vld [vmem:[%s8 + $0xd0] sm:$0xff]
      %v1278 = vld [vmem:[%s8 + $0xd8] sm:$0xff]
      %v1279 = vld [vmem:[%s8 + $0xe0] sm:$0xff]
      %v1280 = vld [vmem:[%s8 + $0xe8] sm:$0xff]
      %v1281 = vld [vmem:[%s8 + $0xf0] sm:$0xff]
      %v1282 = vld [vmem:[%s8 + $0xf8] sm:$0xff]
      %1284 = vset.pattern.permute.xlu0 0
      %1285 = vperm.xlu0 %1284, %v1251
      %v1286 = vpop.permute.xlu0 %1285
      %1289 = vset.pattern.permute.xlu0 0
      %1290 = vperm.xlu0 %1289, %v1252
      %v1291 = vpop.permute.xlu0 %1290
      %1294 = vset.pattern.permute.xlu0 0
      %1295 = vperm.xlu0 %1294, %v1253
      %v1296 = vpop.permute.xlu0 %1295
      %1299 = vset.pattern.permute.xlu0 0
      %1300 = vperm.xlu0 %1299, %v1254
      %v1301 = vpop.permute.xlu0 %1300
      %1304 = vset.pattern.permute.xlu0 0
      %1305 = vperm.xlu0 %1304, %v1255
      %v1306 = vpop.permute.xlu0 %1305
      %1309 = vset.pattern.permute.xlu0 0
      %1310 = vperm.xlu0 %1309, %v1256
      %v1311 = vpop.permute.xlu0 %1310
      %1314 = vset.pattern.permute.xlu0 0
      %1315 = vperm.xlu0 %1314, %v1257
      %v1316 = vpop.permute.xlu0 %1315
      %1319 = vset.pattern.permute.xlu0 0
      %1320 = vperm.xlu0 %1319, %v1258
      %v1321 = vpop.permute.xlu0 %1320
      %1324 = vset.pattern.permute.xlu0 0
      %1325 = vperm.xlu0 %1324, %v1259
      %v1326 = vpop.permute.xlu0 %1325
      %1329 = vset.pattern.permute.xlu0 0
      %1330 = vperm.xlu0 %1329, %v1260
      %v1331 = vpop.permute.xlu0 %1330
      %1334 = vset.pattern.permute.xlu0 0
      %1335 = vperm.xlu0 %1334, %v1261
      %v1336 = vpop.permute.xlu0 %1335
      %1339 = vset.pattern.permute.xlu0 0
      %1340 = vperm.xlu0 %1339, %v1262
      %v1341 = vpop.permute.xlu0 %1340
      %1344 = vset.pattern.permute.xlu0 0
      %1345 = vperm.xlu0 %1344, %v1263
      %v1346 = vpop.permute.xlu0 %1345
      %1349 = vset.pattern.permute.xlu0 0
      %1350 = vperm.xlu0 %1349, %v1264
      %v1351 = vpop.permute.xlu0 %1350
      %1354 = vset.pattern.permute.xlu0 0
      %1355 = vperm.xlu0 %1354, %v1265
      %v1356 = vpop.permute.xlu0 %1355
      %1359 = vset.pattern.permute.xlu0 0
      %1360 = vperm.xlu0 %1359, %v1266
      %v1361 = vpop.permute.xlu0 %1360
      %1364 = vset.pattern.permute.xlu0 0
      %1365 = vperm.xlu0 %1364, %v1267
      %v1366 = vpop.permute.xlu0 %1365
      %1369 = vset.pattern.permute.xlu0 0
      %1370 = vperm.xlu0 %1369, %v1268
      %v1371 = vpop.permute.xlu0 %1370
      %1374 = vset.pattern.permute.xlu0 0
      %1375 = vperm.xlu0 %1374, %v1269
      %v1376 = vpop.permute.xlu0 %1375
      %1379 = vset.pattern.permute.xlu0 0
      %1380 = vperm.xlu0 %1379, %v1270
      %v1381 = vpop.permute.xlu0 %1380
      %1384 = vset.pattern.permute.xlu0 0
      %1385 = vperm.xlu0 %1384, %v1271
      %v1386 = vpop.permute.xlu0 %1385
      %1389 = vset.pattern.permute.xlu0 0
      %1390 = vperm.xlu0 %1389, %v1272
      %v1391 = vpop.permute.xlu0 %1390
      %1394 = vset.pattern.permute.xlu0 0
      %1395 = vperm.xlu0 %1394, %v1273
      %v1396 = vpop.permute.xlu0 %1395
      %1399 = vset.pattern.permute.xlu0 0
      %1400 = vperm.xlu0 %1399, %v1274
      %v1401 = vpop.permute.xlu0 %1400
      %1404 = vset.pattern.permute.xlu0 0
      %1405 = vperm.xlu0 %1404, %v1275
      %v1406 = vpop.permute.xlu0 %1405
      %1409 = vset.pattern.permute.xlu0 0
      %1410 = vperm.xlu0 %1409, %v1276
      %v1411 = vpop.permute.xlu0 %1410
      %1414 = vset.pattern.permute.xlu0 0
      %1415 = vperm.xlu0 %1414, %v1277
      %v1416 = vpop.permute.xlu0 %1415
      %1419 = vset.pattern.permute.xlu0 0
      %1420 = vperm.xlu0 %1419, %v1278
      %v1421 = vpop.permute.xlu0 %1420
      %1424 = vset.pattern.permute.xlu0 0
      %1425 = vperm.xlu0 %1424, %v1279
      %v1426 = vpop.permute.xlu0 %1425
      %1429 = vset.pattern.permute.xlu0 0
      %1430 = vperm.xlu0 %1429, %v1280
      %v1431 = vpop.permute.xlu0 %1430
      %1434 = vset.pattern.permute.xlu0 0
      %1435 = vperm.xlu0 %1434, %v1281
      %v1436 = vpop.permute.xlu0 %1435
      %1439 = vset.pattern.permute.xlu0 0
      %1440 = vperm.xlu0 %1439, %v1282
      %v1441 = vpop.permute.xlu0 %1440
      %v1475 = vunpack.c.l.b16 %v1211
      %v1476 = vunpack.c.l.b16 %v1212
      %v1477 = vunpack.c.l.b16 %v1213
      %v1478 = vunpack.c.l.b16 %v1214
      %v1479 = vunpack.c.l.b16 %v1215
      %v1480 = vunpack.c.l.b16 %v1216
      %v1481 = vunpack.c.l.b16 %v1217
      %v1482 = vunpack.c.l.b16 %v1218
      %v1483 = vunpack.c.l.b16 %v1219
      %v1484 = vunpack.c.l.b16 %v1220
      %v1485 = vunpack.c.l.b16 %v1221
      %v1486 = vunpack.c.l.b16 %v1222
      %v1487 = vunpack.c.l.b16 %v1223
      %v1488 = vunpack.c.l.b16 %v1224
      %v1489 = vunpack.c.l.b16 %v1225
      %v1490 = vunpack.c.l.b16 %v1226
      %v1491 = vunpack.c.l.b16 %v1227
      %v1492 = vunpack.c.l.b16 %v1228
      %v1493 = vunpack.c.l.b16 %v1229
      %v1494 = vunpack.c.l.b16 %v1230
      %v1495 = vunpack.c.l.b16 %v1231
      %v1496 = vunpack.c.l.b16 %v1232
      %v1497 = vunpack.c.l.b16 %v1233
      %v1498 = vunpack.c.l.b16 %v1234
      %v1499 = vunpack.c.l.b16 %v1235
      %v1500 = vunpack.c.l.b16 %v1236
      %v1501 = vunpack.c.l.b16 %v1237
      %v1502 = vunpack.c.l.b16 %v1238
      %v1503 = vunpack.c.l.b16 %v1239
      %v1504 = vunpack.c.l.b16 %v1240
      %v1505 = vunpack.c.l.b16 %v1241
      %v1506 = vunpack.c.l.b16 %v1242
      %v1507 = vpack.c.b16 %v1476, %v1475
      %v1508 = vpack.c.b16 %v1478, %v1477
      %v1509 = vpack.c.b16 %v1480, %v1479
      %v1510 = vpack.c.b16 %v1482, %v1481
      %v1511 = vpack.c.b16 %v1484, %v1483
      %v1512 = vpack.c.b16 %v1486, %v1485
      %v1513 = vpack.c.b16 %v1488, %v1487
      %v1514 = vpack.c.b16 %v1490, %v1489
      %v1515 = vpack.c.b16 %v1492, %v1491
      %v1516 = vpack.c.b16 %v1494, %v1493
      %v1517 = vpack.c.b16 %v1496, %v1495
      %v1518 = vpack.c.b16 %v1498, %v1497
      %v1519 = vpack.c.b16 %v1500, %v1499
      %v1520 = vpack.c.b16 %v1502, %v1501
      %v1521 = vpack.c.b16 %v1504, %v1503
      %v1522 = vpack.c.b16 %v1506, %v1505
      %1539 = vmatpush.bf16.msra.mxu0 %v1250
      %1540 = vmatpush.bf16.msra.mxu0 %v1249
      %1541 = vmatpush.bf16.msra.mxu0 %v1248
      %1542 = vmatpush.bf16.msra.mxu0 %v1247
      %1543 = vmatpush.bf16.msra.mxu0 %v1246
      %1544 = vmatpush.bf16.msra.mxu0 %v1245
      %1545 = vmatpush.bf16.msra.mxu0 %v1244
      %1546 = vmatpush.bf16.msra.mxu0 %v1243
      %1547 = vmatmul.bf16.gmra.mxu0 %v1507
      %v1548 = vpop.f32.mrf.mxu0
      %v1549 = vadd.f32 %v1286, %v1548
      %v1550 = vpop.f32.mrf.mxu0
      %v1551 = vadd.f32 %v1291, %v1550
      %1552 = vmatmul.bf16.gmra.mxu0 %v1508
      %v1553 = vpop.f32.mrf.mxu0
      %v1554 = vadd.f32 %v1296, %v1553
      %v1555 = vpop.f32.mrf.mxu0
      %v1556 = vadd.f32 %v1301, %v1555
      %1557 = vmatmul.bf16.gmra.mxu0 %v1509
      %v1558 = vpop.f32.mrf.mxu0
      %v1559 = vadd.f32 %v1306, %v1558
      %v1560 = vpop.f32.mrf.mxu0
      %v1561 = vadd.f32 %v1311, %v1560
      %1562 = vmatmul.bf16.gmra.mxu0 %v1510
      %v1563 = vpop.f32.mrf.mxu0
      %v1564 = vadd.f32 %v1316, %v1563
      %v1565 = vpop.f32.mrf.mxu0
      %v1566 = vadd.f32 %v1321, %v1565
      %1567 = vmatmul.bf16.gmra.mxu0 %v1511
      %v1568 = vpop.f32.mrf.mxu0
      %v1569 = vadd.f32 %v1326, %v1568
      %v1570 = vpop.f32.mrf.mxu0
      %v1571 = vadd.f32 %v1331, %v1570
      %1572 = vmatmul.bf16.gmra.mxu0 %v1512
      %v1573 = vpop.f32.mrf.mxu0
      %v1574 = vadd.f32 %v1336, %v1573
      %v1575 = vpop.f32.mrf.mxu0
      %v1576 = vadd.f32 %v1341, %v1575
      %1577 = vmatmul.bf16.gmra.mxu0 %v1513
      %v1578 = vpop.f32.mrf.mxu0
      %v1579 = vadd.f32 %v1346, %v1578
      %v1580 = vpop.f32.mrf.mxu0
      %v1581 = vadd.f32 %v1351, %v1580
      %1582 = vmatmul.bf16.gmra.mxu0 %v1514
      %v1583 = vpop.f32.mrf.mxu0
      %v1584 = vadd.f32 %v1356, %v1583
      %v1585 = vpop.f32.mrf.mxu0
      %v1586 = vadd.f32 %v1361, %v1585
      %1587 = vmatmul.bf16.gmra.mxu0 %v1515
      %v1588 = vpop.f32.mrf.mxu0
      %v1589 = vadd.f32 %v1366, %v1588
      %v1590 = vpop.f32.mrf.mxu0
      %v1591 = vadd.f32 %v1371, %v1590
      %1592 = vmatmul.bf16.gmra.mxu0 %v1516
      %v1593 = vpop.f32.mrf.mxu0
      %v1594 = vadd.f32 %v1376, %v1593
      %v1595 = vpop.f32.mrf.mxu0
      %v1596 = vadd.f32 %v1381, %v1595
      %1597 = vmatmul.bf16.gmra.mxu0 %v1517
      %v1598 = vpop.f32.mrf.mxu0
      %v1599 = vadd.f32 %v1386, %v1598
      %v1600 = vpop.f32.mrf.mxu0
      %v1601 = vadd.f32 %v1391, %v1600
      %1602 = vmatmul.bf16.gmra.mxu0 %v1518
      %v1603 = vpop.f32.mrf.mxu0
      %v1604 = vadd.f32 %v1396, %v1603
      %v1605 = vpop.f32.mrf.mxu0
      %v1606 = vadd.f32 %v1401, %v1605
      %1607 = vmatmul.bf16.gmra.mxu0 %v1519
      %v1608 = vpop.f32.mrf.mxu0
      %v1609 = vadd.f32 %v1406, %v1608
      %v1610 = vpop.f32.mrf.mxu0
      %v1611 = vadd.f32 %v1411, %v1610
      %1612 = vmatmul.bf16.gmra.mxu0 %v1520
      %v1613 = vpop.f32.mrf.mxu0
      %v1614 = vadd.f32 %v1416, %v1613
      %v1615 = vpop.f32.mrf.mxu0
      %v1616 = vadd.f32 %v1421, %v1615
      %1617 = vmatmul.bf16.gmra.mxu0 %v1521
      %v1618 = vpop.f32.mrf.mxu0
      %v1619 = vadd.f32 %v1426, %v1618
      %v1620 = vpop.f32.mrf.mxu0
      %v1621 = vadd.f32 %v1431, %v1620
      %1622 = vmatmul.bf16.gmra.mxu0 %v1522
      %v1623 = vpop.f32.mrf.mxu0
      %v1624 = vadd.f32 %v1436, %v1623
      %v1625 = vpop.f32.mrf.mxu0
      %v1626 = vadd.f32 %v1441, %v1625
      %1627 = vdwg.mxu0
      %v1628 = vmax.f32 %v1549, 0.0
      %v1629 = vmax.f32 %v1551, 0.0
      %v1630 = vmax.f32 %v1554, 0.0
      %v1631 = vmax.f32 %v1556, 0.0
      %v1632 = vmax.f32 %v1559, 0.0
      %v1633 = vmax.f32 %v1561, 0.0
      %v1634 = vmax.f32 %v1564, 0.0
      %v1635 = vmax.f32 %v1566, 0.0
      %v1636 = vmax.f32 %v1569, 0.0
      %v1637 = vmax.f32 %v1571, 0.0
      %v1638 = vmax.f32 %v1574, 0.0
      %v1639 = vmax.f32 %v1576, 0.0
      %v1640 = vmax.f32 %v1579, 0.0
      %v1641 = vmax.f32 %v1581, 0.0
      %v1642 = vmax.f32 %v1584, 0.0
      %v1643 = vmax.f32 %v1586, 0.0
      %v1644 = vmax.f32 %v1589, 0.0
      %v1645 = vmax.f32 %v1591, 0.0
      %v1646 = vmax.f32 %v1594, 0.0
      %v1647 = vmax.f32 %v1596, 0.0
      %v1648 = vmax.f32 %v1599, 0.0
      %v1649 = vmax.f32 %v1601, 0.0
      %v1650 = vmax.f32 %v1604, 0.0
      %v1651 = vmax.f32 %v1606, 0.0
      %v1652 = vmax.f32 %v1609, 0.0
      %v1653 = vmax.f32 %v1611, 0.0
      %v1654 = vmax.f32 %v1614, 0.0
      %v1655 = vmax.f32 %v1616, 0.0
      %v1656 = vmax.f32 %v1619, 0.0
      %v1657 = vmax.f32 %v1621, 0.0
      %v1658 = vmax.f32 %v1624, 0.0
      %v1659 = vmax.f32 %v1626, 0.0
      %p1660 = scmp.eq.s32.totalorder %s32, 0
      // Predicated region
      $region73: #{tpu_custom_call.1} parent=71 // pred_check
        %p1661 = pneg %p1660
      $region74: #{tpu_custom_call.1} parent=71 // pred_check_branch
        %1663 = sbr.rel (%p1661) target = $region76
      $region75: #{tpu_custom_call.1} parent=71 // pred_region
        %vm1664 = vcmask 7168
        %1665 = vst.msk [vmem:[#allocation2] sm:$0xff] %vm1664, -inf
        %1666 = vst.msk [vmem:[#allocation2 + $0x8] sm:$0xff] %vm1664, -inf
        %1667 = vst.msk [vmem:[#allocation2 + $0x10] sm:$0xff] %vm1664, -inf
        %1668 = vst.msk [vmem:[#allocation2 + $0x18] sm:$0xff] %vm1664, -inf
        %1669 = vst.msk [vmem:[#allocation2 + $0x20] sm:$0xff] %vm1664, -inf
        %1670 = vst.msk [vmem:[#allocation2 + $0x28] sm:$0xff] %vm1664, -inf
        %1671 = vst.msk [vmem:[#allocation2 + $0x30] sm:$0xff] %vm1664, -inf
        %1672 = vst.msk [vmem:[#allocation2 + $0x38] sm:$0xff] %vm1664, -inf
        %1673 = vst.msk [vmem:[#allocation2 + $0x40] sm:$0xff] %vm1664, -inf
        %1674 = vst.msk [vmem:[#allocation2 + $0x48] sm:$0xff] %vm1664, -inf
        %1675 = vst.msk [vmem:[#allocation2 + $0x50] sm:$0xff] %vm1664, -inf
        %1676 = vst.msk [vmem:[#allocation2 + $0x58] sm:$0xff] %vm1664, -inf
        %1677 = vst.msk [vmem:[#allocation2 + $0x60] sm:$0xff] %vm1664, -inf
        %1678 = vst.msk [vmem:[#allocation2 + $0x68] sm:$0xff] %vm1664, -inf
        %1679 = vst.msk [vmem:[#allocation2 + $0x70] sm:$0xff] %vm1664, -inf
        %1680 = vst.msk [vmem:[#allocation2 + $0x78] sm:$0xff] %vm1664, -inf
        %1681 = vst.msk [vmem:[#allocation2 + $0x80] sm:$0xff] %vm1664, -inf
        %1682 = vst.msk [vmem:[#allocation2 + $0x88] sm:$0xff] %vm1664, -inf
        %1683 = vst.msk [vmem:[#allocation2 + $0x90] sm:$0xff] %vm1664, -inf
        %1684 = vst.msk [vmem:[#allocation2 + $0x98] sm:$0xff] %vm1664, -inf
        %1685 = vst.msk [vmem:[#allocation2 + $0xa0] sm:$0xff] %vm1664, -inf
        %1686 = vst.msk [vmem:[#allocation2 + $0xa8] sm:$0xff] %vm1664, -inf
        %1687 = vst.msk [vmem:[#allocation2 + $0xb0] sm:$0xff] %vm1664, -inf
        %1688 = vst.msk [vmem:[#allocation2 + $0xb8] sm:$0xff] %vm1664, -inf
        %1689 = vst.msk [vmem:[#allocation2 + $0xc0] sm:$0xff] %vm1664, -inf
        %1690 = vst.msk [vmem:[#allocation2 + $0xc8] sm:$0xff] %vm1664, -inf
        %1691 = vst.msk [vmem:[#allocation2 + $0xd0] sm:$0xff] %vm1664, -inf
        %1692 = vst.msk [vmem:[#allocation2 + $0xd8] sm:$0xff] %vm1664, -inf
        %1693 = vst.msk [vmem:[#allocation2 + $0xe0] sm:$0xff] %vm1664, -inf
        %1694 = vst.msk [vmem:[#allocation2 + $0xe8] sm:$0xff] %vm1664, -inf
        %1695 = vst.msk [vmem:[#allocation2 + $0xf0] sm:$0xff] %vm1664, -inf
        %1696 = vst.msk [vmem:[#allocation2 + $0xf8] sm:$0xff] %vm1664, -inf
      $region76: #{tpu_custom_call.1} parent=71 // pred_fallthru
        _
      %v1697 = vld [vmem:[#allocation2] sm:$0xff]
      %v1698 = vld [vmem:[#allocation2 + $0x8] sm:$0xff]
      %v1699 = vld [vmem:[#allocation2 + $0x10] sm:$0xff]
      %v1700 = vld [vmem:[#allocation2 + $0x18] sm:$0xff]
      %v1701 = vld [vmem:[#allocation2 + $0x20] sm:$0xff]
      %v1702 = vld [vmem:[#allocation2 + $0x28] sm:$0xff]
      %v1703 = vld [vmem:[#allocation2 + $0x30] sm:$0xff]
      %v1704 = vld [vmem:[#allocation2 + $0x38] sm:$0xff]
      %v1705 = vld [vmem:[#allocation2 + $0x40] sm:$0xff]
      %v1706 = vld [vmem:[#allocation2 + $0x48] sm:$0xff]
      %v1707 = vld [vmem:[#allocation2 + $0x50] sm:$0xff]
      %v1708 = vld [vmem:[#allocation2 + $0x58] sm:$0xff]
      %v1709 = vld [vmem:[#allocation2 + $0x60] sm:$0xff]
      %v1710 = vld [vmem:[#allocation2 + $0x68] sm:$0xff]
      %v1711 = vld [vmem:[#allocation2 + $0x70] sm:$0xff]
      %v1712 = vld [vmem:[#allocation2 + $0x78] sm:$0xff]
      %v1713 = vld [vmem:[#allocation2 + $0x80] sm:$0xff]
      %v1714 = vld [vmem:[#allocation2 + $0x88] sm:$0xff]
      %v1715 = vld [vmem:[#allocation2 + $0x90] sm:$0xff]
      %v1716 = vld [vmem:[#allocation2 + $0x98] sm:$0xff]
      %v1717 = vld [vmem:[#allocation2 + $0xa0] sm:$0xff]
      %v1718 = vld [vmem:[#allocation2 + $0xa8] sm:$0xff]
      %v1719 = vld [vmem:[#allocation2 + $0xb0] sm:$0xff]
      %v1720 = vld [vmem:[#allocation2 + $0xb8] sm:$0xff]
      %v1721 = vld [vmem:[#allocation2 + $0xc0] sm:$0xff]
      %v1722 = vld [vmem:[#allocation2 + $0xc8] sm:$0xff]
      %v1723 = vld [vmem:[#allocation2 + $0xd0] sm:$0xff]
      %v1724 = vld [vmem:[#allocation2 + $0xd8] sm:$0xff]
      %v1725 = vld [vmem:[#allocation2 + $0xe0] sm:$0xff]
      %v1726 = vld [vmem:[#allocation2 + $0xe8] sm:$0xff]
      %v1727 = vld [vmem:[#allocation2 + $0xf0] sm:$0xff]
      %v1728 = vld [vmem:[#allocation2 + $0xf8] sm:$0xff]
      %1729 = vmax.xlane.f32.xlu0 %v1628
      %v1730 = vpop.xlane.xlu0 %1729
      %1731 = vmax.xlane.f32.xlu0 %v1629
      %v1732 = vpop.xlane.xlu0 %1731
      %1733 = vmax.xlane.f32.xlu0 %v1630
      %v1734 = vpop.xlane.xlu0 %1733
      %1735 = vmax.xlane.f32.xlu0 %v1631
      %v1736 = vpop.xlane.xlu0 %1735
      %1737 = vmax.xlane.f32.xlu0 %v1632
      %v1738 = vpop.xlane.xlu0 %1737
      %1739 = vmax.xlane.f32.xlu0 %v1633
      %v1740 = vpop.xlane.xlu0 %1739
      %1741 = vmax.xlane.f32.xlu0 %v1634
      %v1742 = vpop.xlane.xlu0 %1741
      %1743 = vmax.xlane.f32.xlu0 %v1635
      %v1744 = vpop.xlane.xlu0 %1743
      %1745 = vmax.xlane.f32.xlu0 %v1636
      %v1746 = vpop.xlane.xlu0 %1745
      %1747 = vmax.xlane.f32.xlu0 %v1637
      %v1748 = vpop.xlane.xlu0 %1747
      %1749 = vmax.xlane.f32.xlu0 %v1638
      %v1750 = vpop.xlane.xlu0 %1749
      %1751 = vmax.xlane.f32.xlu0 %v1639
      %v1752 = vpop.xlane.xlu0 %1751
      %1753 = vmax.xlane.f32.xlu0 %v1640
      %v1754 = vpop.xlane.xlu0 %1753
      %1755 = vmax.xlane.f32.xlu0 %v1641
      %v1756 = vpop.xlane.xlu0 %1755
      %1757 = vmax.xlane.f32.xlu0 %v1642
      %v1758 = vpop.xlane.xlu0 %1757
      %1759 = vmax.xlane.f32.xlu0 %v1643
      %v1760 = vpop.xlane.xlu0 %1759
      %1761 = vmax.xlane.f32.xlu0 %v1644
      %v1762 = vpop.xlane.xlu0 %1761
      %1763 = vmax.xlane.f32.xlu0 %v1645
      %v1764 = vpop.xlane.xlu0 %1763
      %1765 = vmax.xlane.f32.xlu0 %v1646
      %v1766 = vpop.xlane.xlu0 %1765
      %1767 = vmax.xlane.f32.xlu0 %v1647
      %v1768 = vpop.xlane.xlu0 %1767
      %1769 = vmax.xlane.f32.xlu0 %v1648
      %v1770 = vpop.xlane.xlu0 %1769
      %1771 = vmax.xlane.f32.xlu0 %v1649
      %v1772 = vpop.xlane.xlu0 %1771
      %1773 = vmax.xlane.f32.xlu0 %v1650
      %v1774 = vpop.xlane.xlu0 %1773
      %1775 = vmax.xlane.f32.xlu0 %v1651
      %v1776 = vpop.xlane.xlu0 %1775
      %1777 = vmax.xlane.f32.xlu0 %v1652
      %v1778 = vpop.xlane.xlu0 %1777
      %1779 = vmax.xlane.f32.xlu0 %v1653
      %v1780 = vpop.xlane.xlu0 %1779
      %1781 = vmax.xlane.f32.xlu0 %v1654
      %v1782 = vpop.xlane.xlu0 %1781
      %1783 = vmax.xlane.f32.xlu0 %v1655
      %v1784 = vpop.xlane.xlu0 %1783
      %1785 = vmax.xlane.f32.xlu0 %v1656
      %v1786 = vpop.xlane.xlu0 %1785
      %1787 = vmax.xlane.f32.xlu0 %v1657
      %v1788 = vpop.xlane.xlu0 %1787
      %1789 = vmax.xlane.f32.xlu0 %v1658
      %v1790 = vpop.xlane.xlu0 %1789
      %1791 = vmax.xlane.f32.xlu0 %v1659
      %v1792 = vpop.xlane.xlu0 %1791
      %v1793 = vmax.f32 %v1697, %v1730
      %v1794 = vmax.f32 %v1698, %v1732
      %v1795 = vmax.f32 %v1699, %v1734
      %v1796 = vmax.f32 %v1700, %v1736
      %v1797 = vmax.f32 %v1701, %v1738
      %v1798 = vmax.f32 %v1702, %v1740
      %v1799 = vmax.f32 %v1703, %v1742
      %v1800 = vmax.f32 %v1704, %v1744
      %v1801 = vmax.f32 %v1705, %v1746
      %v1802 = vmax.f32 %v1706, %v1748
      %v1803 = vmax.f32 %v1707, %v1750
      %v1804 = vmax.f32 %v1708, %v1752
      %v1805 = vmax.f32 %v1709, %v1754
      %v1806 = vmax.f32 %v1710, %v1756
      %v1807 = vmax.f32 %v1711, %v1758
      %v1808 = vmax.f32 %v1712, %v1760
      %v1809 = vmax.f32 %v1713, %v1762
      %v1810 = vmax.f32 %v1714, %v1764
      %v1811 = vmax.f32 %v1715, %v1766
      %v1812 = vmax.f32 %v1716, %v1768
      %v1813 = vmax.f32 %v1717, %v1770
      %v1814 = vmax.f32 %v1718, %v1772
      %v1815 = vmax.f32 %v1719, %v1774
      %v1816 = vmax.f32 %v1720, %v1776
      %v1817 = vmax.f32 %v1721, %v1778
      %v1818 = vmax.f32 %v1722, %v1780
      %v1819 = vmax.f32 %v1723, %v1782
      %v1820 = vmax.f32 %v1724, %v1784
      %v1821 = vmax.f32 %v1725, %v1786
      %v1822 = vmax.f32 %v1726, %v1788
      %v1823 = vmax.f32 %v1727, %v1790
      %v1824 = vmax.f32 %v1728, %v1792
      %vm1825 = vcmask 7168
      %1826 = vst.msk [vmem:[#allocation2] sm:$0xff] %vm1825, %v1793
      %1827 = vst.msk [vmem:[#allocation2 + $0x8] sm:$0xff] %vm1825, %v1794
      %1828 = vst.msk [vmem:[#allocation2 + $0x10] sm:$0xff] %vm1825, %v1795
      %1829 = vst.msk [vmem:[#allocation2 + $0x18] sm:$0xff] %vm1825, %v1796
      %1830 = vst.msk [vmem:[#allocation2 + $0x20] sm:$0xff] %vm1825, %v1797
      %1831 = vst.msk [vmem:[#allocation2 + $0x28] sm:$0xff] %vm1825, %v1798
      %1832 = vst.msk [vmem:[#allocation2 + $0x30] sm:$0xff] %vm1825, %v1799
      %1833 = vst.msk [vmem:[#allocation2 + $0x38] sm:$0xff] %vm1825, %v1800
      %1834 = vst.msk [vmem:[#allocation2 + $0x40] sm:$0xff] %vm1825, %v1801
      %1835 = vst.msk [vmem:[#allocation2 + $0x48] sm:$0xff] %vm1825, %v1802
      %1836 = vst.msk [vmem:[#allocation2 + $0x50] sm:$0xff] %vm1825, %v1803
      %1837 = vst.msk [vmem:[#allocation2 + $0x58] sm:$0xff] %vm1825, %v1804
      %1838 = vst.msk [vmem:[#allocation2 + $0x60] sm:$0xff] %vm1825, %v1805
      %1839 = vst.msk [vmem:[#allocation2 + $0x68] sm:$0xff] %vm1825, %v1806
      %1840 = vst.msk [vmem:[#allocation2 + $0x70] sm:$0xff] %vm1825, %v1807
      %1841 = vst.msk [vmem:[#allocation2 + $0x78] sm:$0xff] %vm1825, %v1808
      %1842 = vst.msk [vmem:[#allocation2 + $0x80] sm:$0xff] %vm1825, %v1809
      %1843 = vst.msk [vmem:[#allocation2 + $0x88] sm:$0xff] %vm1825, %v1810
      %1844 = vst.msk [vmem:[#allocation2 + $0x90] sm:$0xff] %vm1825, %v1811
      %1845 = vst.msk [vmem:[#allocation2 + $0x98] sm:$0xff] %vm1825, %v1812
      %1846 = vst.msk [vmem:[#allocation2 + $0xa0] sm:$0xff] %vm1825, %v1813
      %1847 = vst.msk [vmem:[#allocation2 + $0xa8] sm:$0xff] %vm1825, %v1814
      %1848 = vst.msk [vmem:[#allocation2 + $0xb0] sm:$0xff] %vm1825, %v1815
      %1849 = vst.msk [vmem:[#allocation2 + $0xb8] sm:$0xff] %vm1825, %v1816
      %1850 = vst.msk [vmem:[#allocation2 + $0xc0] sm:$0xff] %vm1825, %v1817
      %1851 = vst.msk [vmem:[#allocation2 + $0xc8] sm:$0xff] %vm1825, %v1818
      %1852 = vst.msk [vmem:[#allocation2 + $0xd0] sm:$0xff] %vm1825, %v1819
      %1853 = vst.msk [vmem:[#allocation2 + $0xd8] sm:$0xff] %vm1825, %v1820
      %1854 = vst.msk [vmem:[#allocation2 + $0xe0] sm:$0xff] %vm1825, %v1821
      %1855 = vst.msk [vmem:[#allocation2 + $0xe8] sm:$0xff] %vm1825, %v1822
      %1856 = vst.msk [vmem:[#allocation2 + $0xf0] sm:$0xff] %vm1825, %v1823
      %1857 = vst.msk [vmem:[#allocation2 + $0xf8] sm:$0xff] %vm1825, %v1824
      // Predicated region
      $region77: #{tpu_custom_call.1} parent=71 // pred_check
        %p1858 = pneg %p1660
      $region78: #{tpu_custom_call.1} parent=71 // pred_check_branch
        %1860 = sbr.rel (%p1858) target = $region80
      $region79: #{tpu_custom_call.1} parent=71 // pred_region
        %v1861 = vld [vmem:[#allocation2] sm:$0xff]
        %v1862 = vld [vmem:[#allocation2 + $0x8] sm:$0xff]
        %v1863 = vld [vmem:[#allocation2 + $0x10] sm:$0xff]
        %v1864 = vld [vmem:[#allocation2 + $0x18] sm:$0xff]
        %v1865 = vld [vmem:[#allocation2 + $0x20] sm:$0xff]
        %v1866 = vld [vmem:[#allocation2 + $0x28] sm:$0xff]
        %v1867 = vld [vmem:[#allocation2 + $0x30] sm:$0xff]
        %v1868 = vld [vmem:[#allocation2 + $0x38] sm:$0xff]
        %v1869 = vld [vmem:[#allocation2 + $0x40] sm:$0xff]
        %v1870 = vld [vmem:[#allocation2 + $0x48] sm:$0xff]
        %v1871 = vld [vmem:[#allocation2 + $0x50] sm:$0xff]
        %v1872 = vld [vmem:[#allocation2 + $0x58] sm:$0xff]
        %v1873 = vld [vmem:[#allocation2 + $0x60] sm:$0xff]
        %v1874 = vld [vmem:[#allocation2 + $0x68] sm:$0xff]
        %v1875 = vld [vmem:[#allocation2 + $0x70] sm:$0xff]
        %v1876 = vld [vmem:[#allocation2 + $0x78] sm:$0xff]
        %v1877 = vld [vmem:[#allocation2 + $0x80] sm:$0xff]
        %v1878 = vld [vmem:[#allocation2 + $0x88] sm:$0xff]
        %v1879 = vld [vmem:[#allocation2 + $0x90] sm:$0xff]
        %v1880 = vld [vmem:[#allocation2 + $0x98] sm:$0xff]
        %v1881 = vld [vmem:[#allocation2 + $0xa0] sm:$0xff]
        %v1882 = vld [vmem:[#allocation2 + $0xa8] sm:$0xff]
        %v1883 = vld [vmem:[#allocation2 + $0xb0] sm:$0xff]
        %v1884 = vld [vmem:[#allocation2 + $0xb8] sm:$0xff]
        %v1885 = vld [vmem:[#allocation2 + $0xc0] sm:$0xff]
        %v1886 = vld [vmem:[#allocation2 + $0xc8] sm:$0xff]
        %v1887 = vld [vmem:[#allocation2 + $0xd0] sm:$0xff]
        %v1888 = vld [vmem:[#allocation2 + $0xd8] sm:$0xff]
        %v1889 = vld [vmem:[#allocation2 + $0xe0] sm:$0xff]
        %v1890 = vld [vmem:[#allocation2 + $0xe8] sm:$0xff]
        %v1891 = vld [vmem:[#allocation2 + $0xf0] sm:$0xff]
        %v1892 = vld [vmem:[#allocation2 + $0xf8] sm:$0xff]
        %v1893 = vld [vmem:[%s9] sm:$0xff]
        %v1894 = vld [vmem:[%s9 + $0x8] sm:$0xff]
        %v1895 = vld [vmem:[%s9 + $0x10] sm:$0xff]
        %v1896 = vld [vmem:[%s9 + $0x18] sm:$0xff]
        %v1897 = vld [vmem:[%s9 + $0x20] sm:$0xff]
        %v1898 = vld [vmem:[%s9 + $0x28] sm:$0xff]
        %v1899 = vld [vmem:[%s9 + $0x30] sm:$0xff]
        %v1900 = vld [vmem:[%s9 + $0x38] sm:$0xff]
        %v1901 = vld [vmem:[%s9 + $0x40] sm:$0xff]
        %v1902 = vld [vmem:[%s9 + $0x48] sm:$0xff]
        %v1903 = vld [vmem:[%s9 + $0x50] sm:$0xff]
        %v1904 = vld [vmem:[%s9 + $0x58] sm:$0xff]
        %v1905 = vld [vmem:[%s9 + $0x60] sm:$0xff]
        %v1906 = vld [vmem:[%s9 + $0x68] sm:$0xff]
        %v1907 = vld [vmem:[%s9 + $0x70] sm:$0xff]
        %v1908 = vld [vmem:[%s9 + $0x78] sm:$0xff]
        %v1909 = vld [vmem:[%s9 + $0x80] sm:$0xff]
        %v1910 = vld [vmem:[%s9 + $0x88] sm:$0xff]
        %v1911 = vld [vmem:[%s9 + $0x90] sm:$0xff]
        %v1912 = vld [vmem:[%s9 + $0x98] sm:$0xff]
        %v1913 = vld [vmem:[%s9 + $0xa0] sm:$0xff]
        %v1914 = vld [vmem:[%s9 + $0xa8] sm:$0xff]
        %v1915 = vld [vmem:[%s9 + $0xb0] sm:$0xff]
        %v1916 = vld [vmem:[%s9 + $0xb8] sm:$0xff]
        %v1917 = vld [vmem:[%s9 + $0xc0] sm:$0xff]
        %v1918 = vld [vmem:[%s9 + $0xc8] sm:$0xff]
        %v1919 = vld [vmem:[%s9 + $0xd0] sm:$0xff]
        %v1920 = vld [vmem:[%s9 + $0xd8] sm:$0xff]
        %v1921 = vld [vmem:[%s9 + $0xe0] sm:$0xff]
        %v1922 = vld [vmem:[%s9 + $0xe8] sm:$0xff]
        %v1923 = vld [vmem:[%s9 + $0xf0] sm:$0xff]
        %v1924 = vld [vmem:[%s9 + $0xf8] sm:$0xff]
        %1926 = vset.pattern.permute.xlu0 0
        %1927 = vperm.xlu0 %1926, %v1861
        %v1928 = vpop.permute.xlu0 %1927
        %1931 = vset.pattern.permute.xlu0 0
        %1932 = vperm.xlu0 %1931, %v1862
        %v1933 = vpop.permute.xlu0 %1932
        %1936 = vset.pattern.permute.xlu0 0
        %1937 = vperm.xlu0 %1936, %v1863
        %v1938 = vpop.permute.xlu0 %1937
        %1941 = vset.pattern.permute.xlu0 0
        %1942 = vperm.xlu0 %1941, %v1864
        %v1943 = vpop.permute.xlu0 %1942
        %1946 = vset.pattern.permute.xlu0 0
        %1947 = vperm.xlu0 %1946, %v1865
        %v1948 = vpop.permute.xlu0 %1947
        %1951 = vset.pattern.permute.xlu0 0
        %1952 = vperm.xlu0 %1951, %v1866
        %v1953 = vpop.permute.xlu0 %1952
        %1956 = vset.pattern.permute.xlu0 0
        %1957 = vperm.xlu0 %1956, %v1867
        %v1958 = vpop.permute.xlu0 %1957
        %1961 = vset.pattern.permute.xlu0 0
        %1962 = vperm.xlu0 %1961, %v1868
        %v1963 = vpop.permute.xlu0 %1962
        %1966 = vset.pattern.permute.xlu0 0
        %1967 = vperm.xlu0 %1966, %v1869
        %v1968 = vpop.permute.xlu0 %1967
        %1971 = vset.pattern.permute.xlu0 0
        %1972 = vperm.xlu0 %1971, %v1870
        %v1973 = vpop.permute.xlu0 %1972
        %1976 = vset.pattern.permute.xlu0 0
        %1977 = vperm.xlu0 %1976, %v1871
        %v1978 = vpop.permute.xlu0 %1977
        %1981 = vset.pattern.permute.xlu0 0
        %1982 = vperm.xlu0 %1981, %v1872
        %v1983 = vpop.permute.xlu0 %1982
        %1986 = vset.pattern.permute.xlu0 0
        %1987 = vperm.xlu0 %1986, %v1873
        %v1988 = vpop.permute.xlu0 %1987
        %1991 = vset.pattern.permute.xlu0 0
        %1992 = vperm.xlu0 %1991, %v1874
        %v1993 = vpop.permute.xlu0 %1992
        %1996 = vset.pattern.permute.xlu0 0
        %1997 = vperm.xlu0 %1996, %v1875
        %v1998 = vpop.permute.xlu0 %1997
        %2001 = vset.pattern.permute.xlu0 0
        %2002 = vperm.xlu0 %2001, %v1876
        %v2003 = vpop.permute.xlu0 %2002
        %2006 = vset.pattern.permute.xlu0 0
        %2007 = vperm.xlu0 %2006, %v1877
        %v2008 = vpop.permute.xlu0 %2007
        %2011 = vset.pattern.permute.xlu0 0
        %2012 = vperm.xlu0 %2011, %v1878
        %v2013 = vpop.permute.xlu0 %2012
        %2016 = vset.pattern.permute.xlu0 0
        %2017 = vperm.xlu0 %2016, %v1879
        %v2018 = vpop.permute.xlu0 %2017
        %2021 = vset.pattern.permute.xlu0 0
        %2022 = vperm.xlu0 %2021, %v1880
        %v2023 = vpop.permute.xlu0 %2022
        %2026 = vset.pattern.permute.xlu0 0
        %2027 = vperm.xlu0 %2026, %v1881
        %v2028 = vpop.permute.xlu0 %2027
        %2031 = vset.pattern.permute.xlu0 0
        %2032 = vperm.xlu0 %2031, %v1882
        %v2033 = vpop.permute.xlu0 %2032
        %2036 = vset.pattern.permute.xlu0 0
        %2037 = vperm.xlu0 %2036, %v1883
        %v2038 = vpop.permute.xlu0 %2037
        %2041 = vset.pattern.permute.xlu0 0
        %2042 = vperm.xlu0 %2041, %v1884
        %v2043 = vpop.permute.xlu0 %2042
        %2046 = vset.pattern.permute.xlu0 0
        %2047 = vperm.xlu0 %2046, %v1885
        %v2048 = vpop.permute.xlu0 %2047
        %2051 = vset.pattern.permute.xlu0 0
        %2052 = vperm.xlu0 %2051, %v1886
        %v2053 = vpop.permute.xlu0 %2052
        %2056 = vset.pattern.permute.xlu0 0
        %2057 = vperm.xlu0 %2056, %v1887
        %v2058 = vpop.permute.xlu0 %2057
        %2061 = vset.pattern.permute.xlu0 0
        %2062 = vperm.xlu0 %2061, %v1888
        %v2063 = vpop.permute.xlu0 %2062
        %2066 = vset.pattern.permute.xlu0 0
        %2067 = vperm.xlu0 %2066, %v1889
        %v2068 = vpop.permute.xlu0 %2067
        %2071 = vset.pattern.permute.xlu0 0
        %2072 = vperm.xlu0 %2071, %v1890
        %v2073 = vpop.permute.xlu0 %2072
        %2076 = vset.pattern.permute.xlu0 0
        %2077 = vperm.xlu0 %2076, %v1891
        %v2078 = vpop.permute.xlu0 %2077
        %2081 = vset.pattern.permute.xlu0 0
        %2082 = vperm.xlu0 %2081, %v1892
        %v2083 = vpop.permute.xlu0 %2082
        %v2085 = vmul.f32 %v1893, %v1928
        %v2086 = vmul.f32 %v1894, %v1933
        %v2087 = vmul.f32 %v1895, %v1938
        %v2088 = vmul.f32 %v1896, %v1943
        %v2089 = vmul.f32 %v1897, %v1948
        %v2090 = vmul.f32 %v1898, %v1953
        %v2091 = vmul.f32 %v1899, %v1958
        %v2092 = vmul.f32 %v1900, %v1963
        %v2093 = vmul.f32 %v1901, %v1968
        %v2094 = vmul.f32 %v1902, %v1973
        %v2095 = vmul.f32 %v1903, %v1978
        %v2096 = vmul.f32 %v1904, %v1983
        %v2097 = vmul.f32 %v1905, %v1988
        %v2098 = vmul.f32 %v1906, %v1993
        %v2099 = vmul.f32 %v1907, %v1998
        %v2100 = vmul.f32 %v1908, %v2003
        %v2101 = vmul.f32 %v1909, %v2008
        %v2102 = vmul.f32 %v1910, %v2013
        %v2103 = vmul.f32 %v1911, %v2018
        %v2104 = vmul.f32 %v1912, %v2023
        %v2105 = vmul.f32 %v1913, %v2028
        %v2106 = vmul.f32 %v1914, %v2033
        %v2107 = vmul.f32 %v1915, %v2038
        %v2108 = vmul.f32 %v1916, %v2043
        %v2109 = vmul.f32 %v1917, %v2048
        %v2110 = vmul.f32 %v1918, %v2053
        %v2111 = vmul.f32 %v1919, %v2058
        %v2112 = vmul.f32 %v1920, %v2063
        %v2113 = vmul.f32 %v1921, %v2068
        %v2114 = vmul.f32 %v1922, %v2073
        %v2115 = vmul.f32 %v1923, %v2078
        %v2116 = vmul.f32 %v1924, %v2083
        %v2117 = vadd.f32 %v2085, %v2086
        %v2118 = vadd.f32 %v2117, %v2087
        %v2119 = vadd.f32 %v2118, %v2088
        %v2120 = vadd.f32 %v2119, %v2089
        %v2121 = vadd.f32 %v2120, %v2090
        %v2122 = vadd.f32 %v2121, %v2091
        %v2123 = vadd.f32 %v2122, %v2092
        %v2124 = vadd.f32 %v2123, %v2093
        %v2125 = vadd.f32 %v2124, %v2094
        %v2126 = vadd.f32 %v2125, %v2095
        %v2127 = vadd.f32 %v2126, %v2096
        %v2128 = vadd.f32 %v2127, %v2097
        %v2129 = vadd.f32 %v2128, %v2098
        %v2130 = vadd.f32 %v2129, %v2099
        %v2131 = vadd.f32 %v2130, %v2100
        %v2132 = vadd.f32 %v2131, %v2101
        %v2133 = vadd.f32 %v2132, %v2102
        %v2134 = vadd.f32 %v2133, %v2103
        %v2135 = vadd.f32 %v2134, %v2104
        %v2136 = vadd.f32 %v2135, %v2105
        %v2137 = vadd.f32 %v2136, %v2106
        %v2138 = vadd.f32 %v2137, %v2107
        %v2139 = vadd.f32 %v2138, %v2108
        %v2140 = vadd.f32 %v2139, %v2109
        %v2141 = vadd.f32 %v2140, %v2110
        %v2142 = vadd.f32 %v2141, %v2111
        %v2143 = vadd.f32 %v2142, %v2112
        %v2144 = vadd.f32 %v2143, %v2113
        %v2145 = vadd.f32 %v2144, %v2114
        %v2146 = vadd.f32 %v2145, %v2115
        %v2147 = vadd.f32 %v2146, %v2116
        %v2148 = vrot.slane %v2147, 4
        %v2149 = vadd.f32 %v2147, %v2148
        %v2150 = vrot.slane %v2149, 2
        %v2151 = vadd.f32 %v2149, %v2150
        %v2152 = vrot.slane %v2151, 1
        %v2153 = vadd.f32 %v2151, %v2152
        %v2154 = vld [vmem:[%s10] sm:$0x1]
        %v2155 = vadd.f32 %v2153, %v2154
        %v2156 = vmax.f32 %v2155, 0.0
        %v2157 = vld [vmem:[%s11] sm:$0x7f]
        %v2158 = vperm.slane %v2156, 0
        %v2159 = vmul.f32 %v2157, %v2158
        %vm2160 = vcmask 1046528
        %v2161 = vsel %vm2160, %v2159, 0.0
        %2162 = vadd.xlane.f32.xlu0 %v2161
        %v2163 = vpop.xlane.xlu0 %2162
        %v2164 = vld [vmem:[%s12] sm:$0x7f]
        %v2165 = vadd.f32 %v2163, %v2164
        %vm2166 = vcmask 6144
        %2167 = vst.msk [vmem:[%s537] sm:$0x7f] %vm2166, %v2165
        %s2168 = scalar_lea.vmem %s2, %s31
        %v2169 = vld [vmem:[%s2168] sm:$0x1]
        %v2170 = vadd.f32 %v2165, %v2169
        %v2172 = vrot.slane %v2169, 7
        %2173 = vrot.lane.b32.xlu0 %v2172, 127
        %v2174 = vpop.permute.xlu0 %2173
        %v2176 = vadd.f32 %v2165, %v2174
        %v2177 = vrot.slane %v2169, 6
        %2178 = vrot.lane.b32.xlu0 %v2177, 126
        %v2179 = vpop.permute.xlu0 %2178
        %v2181 = vadd.f32 %v2165, %v2179
        %v2182 = vrot.slane %v2169, 5
        %2183 = vrot.lane.b32.xlu0 %v2182, 125
        %v2184 = vpop.permute.xlu0 %2183
        %v2186 = vmul.f32 %v2165, %v2184
        %v2187 = vrot.slane %v2169, 4
        %2188 = vrot.lane.b32.xlu0 %v2187, 124
        %v2189 = vpop.permute.xlu0 %2188
        %v2191 = vmul.f32 %v2165, %v2189
        %v2193 = vrot.slane %v2191, 1
        %v2195 = vsub.f32 %v2186, %v2193
        %v2196 = vrot.slane %v2169, 3
        %2197 = vrot.lane.b32.xlu0 %v2196, 123
        %v2198 = vpop.permute.xlu0 %2197
        %v2200 = vmul.f32 %v2165, %v2198
        %v2202 = vrot.slane %v2200, 2
        %v2204 = vsub.f32 %v2195, %v2202
        %v2205 = vrot.slane %v2169, 2
        %2206 = vrot.lane.b32.xlu0 %v2205, 122
        %v2207 = vpop.permute.xlu0 %2206
        %v2209 = vmul.f32 %v2165, %v2207
        %v2211 = vrot.slane %v2209, 3
        %v2213 = vsub.f32 %v2204, %v2211
        %2214 = vrot.lane.b32.xlu0 %v2182, 124
        %v2215 = vpop.permute.xlu0 %2214
        %v2217 = vmul.f32 %v2165, %v2215
        %2218 = vrot.lane.b32.xlu0 %v2187, 125
        %v2219 = vpop.permute.xlu0 %2218
        %v2221 = vmul.f32 %v2165, %v2219
        %v2223 = vrot.slane %v2221, 1
        %v2225 = vadd.f32 %v2217, %v2223
        %2226 = vrot.lane.b32.xlu0 %v2196, 122
        %v2227 = vpop.permute.xlu0 %2226
        %v2229 = vmul.f32 %v2165, %v2227
        %v2231 = vrot.slane %v2229, 2
        %v2233 = vadd.f32 %v2225, %v2231
        %2234 = vrot.lane.b32.xlu0 %v2205, 123
        %v2235 = vpop.permute.xlu0 %2234
        %v2237 = vmul.f32 %v2165, %v2235
        %v2239 = vrot.slane %v2237, 3
        %v2241 = vsub.f32 %v2233, %v2239
        %2242 = vrot.lane.b32.xlu0 %v2182, 123
        %v2243 = vpop.permute.xlu0 %2242
        %v2245 = vmul.f32 %v2165, %v2243
        %2246 = vrot.lane.b32.xlu0 %v2187, 122
        %v2247 = vpop.permute.xlu0 %2246
        %v2249 = vmul.f32 %v2165, %v2247
        %v2251 = vrot.slane %v2249, 1
        %v2253 = vsub.f32 %v2245, %v2251
        %2254 = vrot.lane.b32.xlu0 %v2196, 125
        %v2255 = vpop.permute.xlu0 %2254
        %v2257 = vmul.f32 %v2165, %v2255
        %v2259 = vrot.slane %v2257, 2
        %v2261 = vadd.f32 %v2253, %v2259
        %2262 = vrot.lane.b32.xlu0 %v2205, 124
        %v2263 = vpop.permute.xlu0 %2262
        %v2265 = vmul.f32 %v2165, %v2263
        %v2267 = vrot.slane %v2265, 3
        %v2269 = vadd.f32 %v2261, %v2267
        %2270 = vrot.lane.b32.xlu0 %v2182, 122
        %v2271 = vpop.permute.xlu0 %2270
        %v2273 = vmul.f32 %v2165, %v2271
        %2274 = vrot.lane.b32.xlu0 %v2187, 123
        %v2275 = vpop.permute.xlu0 %2274
        %v2277 = vmul.f32 %v2165, %v2275
        %v2279 = vrot.slane %v2277, 1
        %v2281 = vadd.f32 %v2273, %v2279
        %2282 = vrot.lane.b32.xlu0 %v2196, 124
        %v2283 = vpop.permute.xlu0 %2282
        %v2285 = vmul.f32 %v2165, %v2283
        %v2287 = vrot.slane %v2285, 2
        %v2289 = vsub.f32 %v2281, %v2287
        %2290 = vrot.lane.b32.xlu0 %v2205, 125
        %v2291 = vpop.permute.xlu0 %2290
        %v2293 = vmul.f32 %v2165, %v2291
        %v2295 = vrot.slane %v2293, 3
        %v2297 = vadd.f32 %v2289, %v2295
        %v2299 = vrot.slane %v2241, 7
        %v2302 = vrot.slane %v2269, 6
        %v2305 = vrot.slane %v2297, 5
        %v2307 = vsel %vm745, %v2170, %v2176
        %v2308 = vsel %vm747, %v2307, %v2181
        %vm2309 = vcmask 1042432
        %v2310 = vsel %vm2309, %v2308, %v2213
        %vm2311 = vcmask 1043456
        %v2312 = vsel %vm2311, %v2310, %v2299
        %vm2313 = vcmask 1044480
        %v2314 = vsel %vm2313, %v2312, %v2302
        %vm2315 = vcmask 1045504
        %v2316 = vsel %vm2315, %v2314, %v2305
        %2317 = vst.msk [vmem:[%s541] sm:$0x7f] %vm2166, %v2316
      $region80: #{tpu_custom_call.1} parent=71 // pred_fallthru
        _
      %p2318 = scmp.lt.s32.totalorder %s31, 1
      %s2319 = scalar_select %p2318, %s31, 1
      %p2320 = scmp.lt.s32.totalorder %s32, 0
      %s2321 = scalar_select %p2320, %s32, 0
      %s2322 = sadd.s32 %s2321, %s2319
      %s2323 = smul.addr %s2322, 4
      %s2324 = scalar_lea.vmem %s13, %s2323
      %p2325 = scmp.lt.s32.totalorder %s31, 1
      %s2326 = scalar_select %p2325, %s31, 1
      %s2327 = smul.addr %s2326, 8
      %s2328 = scalar_lea.vmem %s14, %s2327
      %p2329 = scmp.lt.s32.totalorder %s31, 1
      %s2330 = scalar_select %p2329, %s31, 1
      %s2331 = smul.addr %s2330, 8
      %s2332 = scalar_lea.vmem %s15, %s2331
      // Predicated region
      $region81: #{tpu_custom_call.1} parent=71 // pred_check
        %p2333 = pneg %p339
      $region82: #{tpu_custom_call.1} parent=71 // pred_check_branch
        %2335 = sbr.rel (%p2333) target = $region84
      $region83: #{tpu_custom_call.1} parent=71 // pred_region
        _
      $region84: #{tpu_custom_call.1} parent=71 // pred_fallthru
        _
      // Predicated region
      $region85: #{tpu_custom_call.1} parent=71 // pred_check
        %p2336 = pneg %p365
      $region86: #{tpu_custom_call.1} parent=71 // pred_check_branch
        %2338 = sbr.rel (%p2336) target = $region88
      $region87: #{tpu_custom_call.1} parent=71 // pred_region
        _
      $region88: #{tpu_custom_call.1} parent=71 // pred_fallthru
        _
      // Predicated region
      $region89: #{tpu_custom_call.1} parent=71 // pred_check
        %p2339 = pneg %p391
      $region90: #{tpu_custom_call.1} parent=71 // pred_check_branch
        %2341 = sbr.rel (%p2339) target = $region92
      $region91: #{tpu_custom_call.1} parent=71 // pred_region
        _
      $region92: #{tpu_custom_call.1} parent=71 // pred_fallthru
        _
    $region72: #{tpu_custom_call.1} parent=5 // pred_fallthru
      _
    %p2342 = scmp.le.s32.totalorder 2, %s22
    // Predicated region
    $region93: #{tpu_custom_call.1} parent=5 // pred_check
      %p2343 = pneg %p2342
    $region94: #{tpu_custom_call.1} parent=5 // pred_check_branch
      %2345 = sbr.rel (%p2343) target = $region96
    $region95: #{tpu_custom_call.1} parent=5 // pred_region
      %s2346 = ssub.s32 %s22, 2
      // Predicated region
      $region97: #{tpu_custom_call.1} parent=95 // pred_check
        %p2347 = pneg %p345
      $region98: #{tpu_custom_call.1} parent=95 // pred_check_branch
        %2349 = sbr.rel (%p2347) target = $region100
      $region99: #{tpu_custom_call.1} parent=95 // pred_region
        %p2350 = scmp.lt.s32.totalorder %s33, 1
        %s2351 = scalar_select %p2350, %s33, 1
        %p2352 = scmp.lt.s32.totalorder %s34, 0
        %s2353 = scalar_select %p2352, %s34, 0
        %s2354 = sadd.s32 %s2353, %s2351
        %s2355 = smul.addr %s2354, 4
        %s2356 = scalar_lea.vmem %s13, %s2355
      $region100: #{tpu_custom_call.1} parent=95 // pred_fallthru
        _
      // Predicated region
      $region101: #{tpu_custom_call.1} parent=95 // pred_check
        %p2357 = pneg %p371
      $region102: #{tpu_custom_call.1} parent=95 // pred_check_branch
        %2359 = sbr.rel (%p2357) target = $region104
      $region103: #{tpu_custom_call.1} parent=95 // pred_region
        %p2360 = scmp.lt.s32.totalorder %s33, 1
        %s2361 = scalar_select %p2360, %s33, 1
        %s2362 = smul.addr %s2361, 8
        %s2363 = scalar_lea.vmem %s14, %s2362
      $region104: #{tpu_custom_call.1} parent=95 // pred_fallthru
        _
      // Predicated region
      $region105: #{tpu_custom_call.1} parent=95 // pred_check
        %p2364 = pneg %p397
      $region106: #{tpu_custom_call.1} parent=95 // pred_check_branch
        %2366 = sbr.rel (%p2364) target = $region108
      $region107: #{tpu_custom_call.1} parent=95 // pred_region
        %p2367 = scmp.lt.s32.totalorder %s33, 1
        %s2368 = scalar_select %p2367, %s33, 1
        %s2369 = smul.addr %s2368, 8
        %s2370 = scalar_lea.vmem %s15, %s2369
      $region108: #{tpu_custom_call.1} parent=95 // pred_fallthru
        _
    $region96: #{tpu_custom_call.1} parent=5 // pred_fallthru
      _
  $region6: #{tpu_custom_call.1} parent=0 // loop_footer
    %s26 = sadd.s32 1, %s22
  $region7: #{tpu_custom_call.1} parent=0 // loop_footer_branch
    %21 = sbr.rel target = $region3
  $region8: #{tpu_custom_call.1} parent=0 // loop_exit
    _

</llo_original>
